<compile_context>
chip_gen: v7x
topology: tpu7x:2x2x1
jax: 0.10.0
libtpu: 0.0.40
codegen_flags: <defaults>
</compile_context>

<pallas_src>
import math

import jax
import jax.numpy as jnp
from jax import lax
from jax.experimental import pallas as pl
from jax.experimental.pallas import tpu as pltpu  # noqa: F401  (TPU backend assumed)

# ---------------- config (small, consistent with the module) ----------------
BATCH = 2
SEQ = 8
HIDDEN = 32
NUM_HEADS = 4
HEAD_DIM = HIDDEN // NUM_HEADS          # hidden_size_per_attention_head = 8
HALF_DIM = HEAD_DIM // 2
MAX_POS = 64                            # max_position_embeddings
NORM_FACTOR = math.sqrt(HEAD_DIM)


# ---------------- fused Pallas kernel ----------------

def fused_self_attention_kernel(x_ref, wqkv_ref, bqkv_ref, wd_ref, bd_ref,
                                cos_ref, sin_ref, rot_ref, mask_ref,
                                out_ref, krot_ref, v_ref):
    """Single program, everything VMEM resident.

    x:       (B*S, H)   hidden states, rows ordered (batch, seq)
    wqkv:    (H, 3H)    QKV weight, columns pre-permuted to [Q_all|K_all|V_all]
                        (head-major inside each block); Q columns pre-scaled
                        by 1/sqrt(head_dim)
    bqkv:    (1, 3H)    matching bias (Q part pre-scaled)
    wd:      (H, H)     output dense weight, stored [in, out]
    bd:      (1, H)
    cos/sin: (B*S, H)   full-width rotary tables (tiled per head and batch row)
    rot:     (H, H)     block-diagonal rotate-half matrix: per head, x@rot = [-x_R, x_L]
    mask:    (B, S, S)  additive attention mask
    outputs: out (B*S, H), k_rot (B*S, H), v (B*S, H)  -- lane-dense 2-D stores
    """
    rows, H = x_ref.shape
    B, S, _ = mask_ref.shape
    Dh = HEAD_DIM

    x = x_ref[...]

    # Fused QKV projection on the MXU.
    mixed = (jnp.dot(x, wqkv_ref[...], preferred_element_type=jnp.float32)
             + bqkv_ref[...])

    # 1/sqrt(Dh) was folded into the Q weight/bias columns at prep time
    # (rotary is linear, the score dot is bilinear -> exactly equivalent to
    # the reference's baddbmm alpha=1/norm_factor on the scores).
    q = mixed[:, :H]
    k = mixed[:, H:2 * H]
    v = mixed[:, 2 * H:]

    # Rotary position encoding for all heads at once, shuffle-free:
    #   x_rot = cos * x + sin * (x @ R)
    cos = cos_ref[...]
    sin = sin_ref[...]
    R = rot_ref[...]
    q_rot = cos * q + sin * jnp.dot(q, R, preferred_element_type=jnp.float32)
    k_rot = cos * k + sin * jnp.dot(k, R, preferred_element_type=jnp.float32)

    # present KV cache (post-rotary keys, matching the reference module).
    krot_ref[...] = k_rot.astype(krot_ref.dtype)
    v_ref[...] = v.astype(v_ref.dtype)

    # Causal mask + additive mask, computed once and shared by all heads.
    row_id = lax.broadcasted_iota(jnp.int32, (S, S), 0)
    col_id = lax.broadcasted_iota(jnp.int32, (S, S), 1)
    causal = (row_id >= col_id)[None, :, :]                  # (1, S, S)
    mask_value = jnp.finfo(jnp.float32).min
    add_mask = mask_ref[...]                                 # (B, S, S)

    wd = wd_ref[...]
    acc = jnp.zeros((rows, H), jnp.float32)

    # Heads unrolled inside the single program; per-head dense contribution is
    # accumulated, so no lane concatenation of the per-head contexts is needed.
    for h in range(NUM_HEADS):
        c0 = h * Dh
        qh = q_rot[:, c0:c0 + Dh].reshape(B, S, Dh)
        kh = k_rot[:, c0:c0 + Dh].reshape(B, S, Dh)
        vh = v[:, c0:c0 + Dh].reshape(B, S, Dh)

        scores = jnp.einsum('bqd,bkd->bqk', qh, kh,
                            preferred_element_type=jnp.float32)   # (B, S, S)
        scores = jnp.where(causal, scores, mask_value) + add_mask
        probs = jax.nn.softmax(scores, axis=-1)
        ctx = jnp.einsum('bqk,bkd->bqd', probs, vh,
                         preferred_element_type=jnp.float32)      # (B, S, Dh)

        acc = acc + jnp.dot(ctx.reshape(rows, Dh), wd[c0:c0 + Dh, :],
                            preferred_element_type=jnp.float32)

    out_ref[...] = (acc + bd_ref[...]).astype(out_ref.dtype)


# ---------------- host-side (one-time) preparation ----------------

def rotary_cache(max_seq, head_dim):
    inv_freqs = 0.0001 ** (jnp.arange(0, head_dim, 2, dtype=jnp.float32) / head_dim)
    positions = jnp.arange(max_seq, dtype=jnp.float32)
    angles = positions[:, None] * inv_freqs[None, :]
    return jnp.cos(angles), jnp.sin(angles)          # each [max_seq, head_dim//2]


def rotary_tables(batch, seq):
    """Full-width rotary tables [B*S, H], rows ordered (batch, seq)."""
    cos, sin = rotary_cache(MAX_POS, HEAD_DIM)
    cos, sin = cos[:seq], sin[:seq]                          # [S, Dh//2]
    cos_full = jnp.concatenate([cos, cos], axis=-1)          # [S, Dh]
    sin_full = jnp.concatenate([sin, sin], axis=-1)
    cos_t = jnp.tile(jnp.tile(cos_full, (1, NUM_HEADS)), (batch, 1))   # [B*S, H]
    sin_t = jnp.tile(jnp.tile(sin_full, (1, NUM_HEADS)), (batch, 1))
    return cos_t, sin_t


def rotate_half_matrix():
    """Block-diagonal R such that per head block: x @ R = [-x_right, x_left]."""
    r = jnp.zeros((HEAD_DIM, HEAD_DIM), jnp.float32)
    idx = jnp.arange(HALF_DIM)
    r = r.at[HALF_DIM + idx, idx].set(-1.0)
    r = r.at[idx, HALF_DIM + idx].set(1.0)
    return jnp.kron(jnp.eye(NUM_HEADS, dtype=jnp.float32), r)   # [H, H]


def permute_qkv_columns(w, b):
    """Regroup fused-QKV columns from per-head [q|k|v] (torch chunk layout)
    to [Q_all_heads | K_all_heads | V_all_heads], head-major in each block."""
    idx = jnp.arange(3 * HIDDEN).reshape(NUM_HEADS, 3, HEAD_DIM)
    perm = jnp.concatenate([idx[:, 0, :].reshape(-1),
                            idx[:, 1, :].reshape(-1),
                            idx[:, 2, :].reshape(-1)])
    return w[:, perm], b[perm]


def prepare_constants(params, batch, seq):
    """One-time host preparation (hoisted out of the forward pass)."""
    wqkv, bqkv = permute_qkv_columns(params["qkv_w"], params["qkv_b"])
    # Fold the 1/sqrt(head_dim) score scaling into the Q projection columns.
    scale = 1.0 / NORM_FACTOR
    wqkv = wqkv.at[:, :HIDDEN].multiply(scale)
    bqkv = bqkv.at[:HIDDEN].multiply(scale)
    cos_t, sin_t = rotary_tables(batch, seq)
    return {
        "qkv_w": wqkv,
        "qkv_b": bqkv.reshape(1, -1),
        "dense_w": params["dense_w"],
        "dense_b": params["dense_b"].reshape(1, -1),
        "cos": cos_t,
        "sin": sin_t,
        "rot": rotate_half_matrix(),
    }


def init_params(key):
    k1, k2, k3, k4 = jax.random.split(key, 4)
    bound = 1.0 / math.sqrt(HIDDEN)
    return {
        # stored as [in, out] so the kernel does x @ w (torch stores [out, in])
        "qkv_w": jax.random.uniform(k1, (HIDDEN, 3 * HIDDEN), jnp.float32, -bound, bound),
        "qkv_b": jax.random.uniform(k2, (3 * HIDDEN,), jnp.float32, -bound, bound),
        "dense_w": jax.random.uniform(k3, (HIDDEN, HIDDEN), jnp.float32, -bound, bound),
        "dense_b": jax.random.uniform(k4, (HIDDEN,), jnp.float32, -bound, bound),
    }


# ---------------- forward pass (single pallas_call, fully jitted) ----------------

@jax.jit
def self_attention_forward(hidden_states, attention_mask, prepped):
    """hidden_states: [B, S, H]; attention_mask: [B, 1, S, S] (additive).
    Returns (output [B, S, H], present = (key [B, NH, S, Dh], value [B, NH, S, Dh]))."""
    B, S, H = hidden_states.shape
    x2 = hidden_states.reshape(B * S, H)            # batch-first rows; no transpose
    mask3 = attention_mask[:, 0]                    # [B, S, S]

    out2, k2, v2 = pl.pallas_call(
        fused_self_attention_kernel,
        out_shape=[jax.ShapeDtypeStruct((B * S, H), hidden_states.dtype)] * 3,
    )(x2, prepped["qkv_w"], prepped["qkv_b"], prepped["dense_w"],
      prepped["dense_b"], prepped["cos"], prepped["sin"], prepped["rot"], mask3)

    output = out2.reshape(B, S, H)
    present_k = k2.reshape(B, S, NUM_HEADS, HEAD_DIM).transpose(0, 2, 1, 3)
    present_v = v2.reshape(B, S, NUM_HEADS, HEAD_DIM).transpose(0, 2, 1, 3)
    return output, (present_k, present_v)

# TODO(synk): layer_past / tensor-valued `offset` incremental-decoding path is not
# exercised here (offset=0, no KV-cache concat), matching the default call.


# ---------------- pure-JAX reference (mirrors the torch module) ----------------

def self_attention_reference(hidden_states, attention_mask, params):
    B, S, H = hidden_states.shape
    NH, Dh = NUM_HEADS, HEAD_DIM
    hp = lax.Precision.HIGHEST

    x = jnp.transpose(hidden_states, (1, 0, 2))                        # [S, B, H]
    mixed = jnp.dot(x, params["qkv_w"], precision=hp) + params["qkv_b"]
    mixed = mixed.reshape(S, B, NH, 3 * Dh)
    q, k, v = mixed[..., :Dh], mixed[..., Dh:2 * Dh], mixed[..., 2 * Dh:]

    cos, sin = rotary_cache(MAX_POS, Dh)
    cos = cos[:S][:, None, None, :]
    sin = sin[:S][:, None, None, :]

    def rot(t):
        l, r = t[..., :Dh // 2], t[..., Dh // 2:]
        return jnp.concatenate([cos * l - sin * r, sin * l + cos * r], axis=-1)

    q, k = rot(q), rot(k)
    present = (jnp.transpose(k, (1, 2, 0, 3)), jnp.transpose(v, (1, 2, 0, 3)))

    qb = jnp.transpose(q, (1, 2, 0, 3))                                # [B, NH, S, Dh]
    kb = jnp.transpose(k, (1, 2, 0, 3))
    vb = jnp.transpose(v, (1, 2, 0, 3))
    scores = jnp.einsum('bhqd,bhkd->bhqk', qb, kb, precision=hp) / NORM_FACTOR
    causal = jnp.tril(jnp.ones((S, S), bool))
    scores = jnp.where(causal, scores, jnp.finfo(scores.dtype).min)
    scores = scores + attention_mask
    probs = jax.nn.softmax(scores, axis=-1)
    ctx = jnp.einsum('bhqk,bhkd->bhqd', probs, vb, precision=hp)       # [B, NH, S, Dh]
    ctx = jnp.transpose(ctx, (0, 2, 1, 3)).reshape(B, S, H)
    out = jnp.dot(ctx, params["dense_w"], precision=hp) + params["dense_b"]
    return out, present


if __name__ == "__main__":
    key = jax.random.PRNGKey(0)
    k_params, k_x = jax.random.split(key)

    params = init_params(k_params)
    hidden_states = jax.random.normal(k_x, (BATCH, SEQ, HIDDEN), jnp.float32)
    attention_mask = jnp.zeros((BATCH, 1, SEQ, SEQ), jnp.float32)

    prepped = prepare_constants(params, BATCH, SEQ)
    output, (present_k, present_v) = self_attention_forward(
        hidden_states, attention_mask, prepped)
    jax.block_until_ready((output, present_k, present_v))

    assert output.shape == (BATCH, SEQ, HIDDEN)
    assert present_k.shape == (BATCH, NUM_HEADS, SEQ, HEAD_DIM)
    assert present_v.shape == (BATCH, NUM_HEADS, SEQ, HEAD_DIM)
    assert bool(jnp.all(jnp.isfinite(output)))

    # Cross-check against the pure-JAX transcription of the torch module.
    ref_out, (ref_k, ref_v) = self_attention_reference(
        hidden_states, attention_mask, params)
    assert bool(jnp.allclose(output, ref_out, rtol=2e-2, atol=2e-2))
    assert bool(jnp.allclose(present_k, ref_k, rtol=2e-2, atol=2e-2))
    assert bool(jnp.allclose(present_v, ref_v, rtol=2e-2, atol=2e-2))

    print("KERNEL_OK")
</pallas_src>

<mosaic_0001>
module attributes {stable_mosaic.version = 11 : i64} {
  func.func @fused_self_attention_kernel(%arg0: memref<16x32xf32, #tpu.memory_space<vmem>>, %arg1: memref<32x96xf32, #tpu.memory_space<vmem>>, %arg2: memref<1x96xf32, #tpu.memory_space<vmem>>, %arg3: memref<32x32xf32, #tpu.memory_space<vmem>>, %arg4: memref<1x32xf32, #tpu.memory_space<vmem>>, %arg5: memref<16x32xf32, #tpu.memory_space<vmem>>, %arg6: memref<16x32xf32, #tpu.memory_space<vmem>>, %arg7: memref<32x32xf32, #tpu.memory_space<vmem>>, %arg8: memref<2x8x8xf32, #tpu.memory_space<vmem>>, %arg9: memref<16x32xf32, #tpu.memory_space<vmem>>, %arg10: memref<16x32xf32, #tpu.memory_space<vmem>>, %arg11: memref<16x32xf32, #tpu.memory_space<vmem>>) attributes {dimension_semantics = [], scalar_prefetch = 0 : i64, scratch_operands = 0 : i64, tpu.core_type = #tpu.core_type<tc>} {
    %c0 = arith.constant 0 : index
    %c0_0 = arith.constant 0 : index
    %0 = vector.load %arg0[%c0, %c0_0] : memref<16x32xf32, #tpu.memory_space<vmem>>, vector<16x32xf32>
    %c0_1 = arith.constant 0 : index
    %c0_2 = arith.constant 0 : index
    %1 = vector.load %arg1[%c0_1, %c0_2] : memref<32x96xf32, #tpu.memory_space<vmem>>, vector<32x96xf32>
    %cst = arith.constant dense<0.000000e+00> : vector<16x96xf32>
    %2 = tpu.matmul %0, %1, %cst {dimension_numbers = #tpu.dot_dimension_numbers<[1], [0], [0], [1], [0, 0, 1, 1], [], []>} : vector<16x32xf32>, vector<32x96xf32>, vector<16x96xf32> -> vector<16x96xf32>
    %c0_3 = arith.constant 0 : index
    %c0_4 = arith.constant 0 : index
    %3 = vector.load %arg2[%c0_3, %c0_4] : memref<1x96xf32, #tpu.memory_space<vmem>>, vector<1x96xf32>
    %4 = vector.broadcast %3 : vector<1x96xf32> to vector<16x96xf32>
    %5 = arith.addf %2, %4 : vector<16x96xf32>
    %6 = vector.extract_strided_slice %5 {offsets = [0, 0], sizes = [16, 32], strides = [1, 1]} : vector<16x96xf32> to vector<16x32xf32>
    %7 = vector.extract_strided_slice %5 {offsets = [0, 32], sizes = [16, 32], strides = [1, 1]} : vector<16x96xf32> to vector<16x32xf32>
    %8 = vector.extract_strided_slice %5 {offsets = [0, 64], sizes = [16, 32], strides = [1, 1]} : vector<16x96xf32> to vector<16x32xf32>
    %c0_5 = arith.constant 0 : index
    %c0_6 = arith.constant 0 : index
    %9 = vector.load %arg5[%c0_5, %c0_6] : memref<16x32xf32, #tpu.memory_space<vmem>>, vector<16x32xf32>
    %c0_7 = arith.constant 0 : index
    %c0_8 = arith.constant 0 : index
    %10 = vector.load %arg6[%c0_7, %c0_8] : memref<16x32xf32, #tpu.memory_space<vmem>>, vector<16x32xf32>
    %c0_9 = arith.constant 0 : index
    %c0_10 = arith.constant 0 : index
    %11 = vector.load %arg7[%c0_9, %c0_10] : memref<32x32xf32, #tpu.memory_space<vmem>>, vector<32x32xf32>
    %12 = arith.mulf %9, %6 : vector<16x32xf32>
    %cst_11 = arith.constant dense<0.000000e+00> : vector<16x32xf32>
    %13 = tpu.matmul %6, %11, %cst_11 {dimension_numbers = #tpu.dot_dimension_numbers<[1], [0], [0], [1], [0, 0, 1, 1], [], []>} : vector<16x32xf32>, vector<32x32xf32>, vector<16x32xf32> -> vector<16x32xf32>
    %14 = arith.mulf %10, %13 : vector<16x32xf32>
    %15 = arith.addf %12, %14 : vector<16x32xf32>
    %16 = arith.mulf %9, %7 : vector<16x32xf32>
    %cst_12 = arith.constant dense<0.000000e+00> : vector<16x32xf32>
    %17 = tpu.matmul %7, %11, %cst_12 {dimension_numbers = #tpu.dot_dimension_numbers<[1], [0], [0], [1], [0, 0, 1, 1], [], []>} : vector<16x32xf32>, vector<32x32xf32>, vector<16x32xf32> -> vector<16x32xf32>
    %18 = arith.mulf %10, %17 : vector<16x32xf32>
    %19 = arith.addf %16, %18 : vector<16x32xf32>
    %c0_13 = arith.constant 0 : index
    %c0_14 = arith.constant 0 : index
    %20 = vector.load %arg10[%c0_13, %c0_14] : memref<16x32xf32, #tpu.memory_space<vmem>>, vector<16x32xf32>
    tpu.vector_store %arg10[%c0_13, %c0_14], %19 {strides = array<i32>} : memref<16x32xf32, #tpu.memory_space<vmem>>, vector<16x32xf32>,
    %c0_15 = arith.constant 0 : index
    %c0_16 = arith.constant 0 : index
    %21 = vector.load %arg11[%c0_15, %c0_16] : memref<16x32xf32, #tpu.memory_space<vmem>>, vector<16x32xf32>
    tpu.vector_store %arg11[%c0_15, %c0_16], %8 {strides = array<i32>} : memref<16x32xf32, #tpu.memory_space<vmem>>, vector<16x32xf32>,
    %22 = tpu.iota {dimensions = array<i32: 0>} : vector<8x8xi32>
    %23 = tpu.iota {dimensions = array<i32: 1>} : vector<8x8xi32>
    %24 = arith.cmpi sge, %22, %23 : vector<8x8xi32>
    %25 = vector.shape_cast %24 : vector<8x8xi1> to vector<1x8x8xi1>
    %c0_17 = arith.constant 0 : index
    %c0_18 = arith.constant 0 : index
    %c0_19 = arith.constant 0 : index
    %26 = vector.load %arg8[%c0_17, %c0_18, %c0_19] : memref<2x8x8xf32, #tpu.memory_space<vmem>>, vector<2x8x8xf32>
    %c0_20 = arith.constant 0 : index
    %c0_21 = arith.constant 0 : index
    %27 = vector.load %arg3[%c0_20, %c0_21] : memref<32x32xf32, #tpu.memory_space<vmem>>, vector<32x32xf32>
    %cst_22 = arith.constant 0.000000e+00 : f32
    %28 = vector.broadcast %cst_22 : f32 to vector<16x32xf32>
    %29 = vector.extract_strided_slice %15 {offsets = [0, 0], sizes = [16, 8], strides = [1, 1]} : vector<16x32xf32> to vector<16x8xf32>
    %30 = vector.shape_cast %29 : vector<16x8xf32> to vector<2x8x8xf32>
    %31 = vector.extract_strided_slice %19 {offsets = [0, 0], sizes = [16, 8], strides = [1, 1]} : vector<16x32xf32> to vector<16x8xf32>
    %32 = vector.shape_cast %31 : vector<16x8xf32> to vector<2x8x8xf32>
    %33 = vector.extract_strided_slice %8 {offsets = [0, 0], sizes = [16, 8], strides = [1, 1]} : vector<16x32xf32> to vector<16x8xf32>
    %34 = vector.shape_cast %33 : vector<16x8xf32> to vector<2x8x8xf32>
    "tpu.trace_start"() <{level = 10 : i32, message = "bqd,bkd->bqk"}> : () -> ()
    %cst_23 = arith.constant dense<0.000000e+00> : vector<2x8x8xf32>
    %35 = tpu.matmul %30, %32, %cst_23 {dimension_numbers = #tpu.dot_dimension_numbers<[2], [2], [1], [1], [0, 0, 0, 1, 1, 1], [0], [0]>} : vector<2x8x8xf32>, vector<2x8x8xf32>, vector<2x8x8xf32> -> vector<2x8x8xf32>
    %cst_24 = arith.constant -3.40282347E+38 : f32
    "tpu.trace_stop"() : () -> ()
    %36 = vector.shape_cast %25 : vector<1x8x8xi1> to vector<1x8x8xi1>
    %37 = vector.broadcast %36 : vector<1x8x8xi1> to vector<2x8x8xi1>
    %38 = vector.broadcast %cst_24 : f32 to vector<2x8x8xf32>
    %39 = arith.select %37, %35, %38 : vector<2x8x8xi1>, vector<2x8x8xf32>
    %40 = arith.addf %39, %26 : vector<2x8x8xf32>
    %cst_25 = arith.constant dense<0xFF800000> : vector<2x8xf32>
    %41 = vector.multi_reduction <maximumf>, %40, %cst_25 [2] : vector<2x8x8xf32> to vector<2x8xf32>
    %cst_26 = arith.constant 0xFF800000 : f32
    %42 = vector.broadcast %cst_26 : f32 to vector<2x8xf32>
    %43 = arith.maximumf %42, %41 : vector<2x8xf32>
    %44 = vector.shape_cast %43 : vector<2x8xf32> to vector<2x8x1xf32>
    %45 = vector.broadcast %44 : vector<2x8x1xf32> to vector<2x8x8xf32>
    %46 = arith.subf %40, %45 : vector<2x8x8xf32>
    %47 = math.exp %46 : vector<2x8x8xf32>
    %cst_27 = arith.constant dense<0.000000e+00> : vector<2x8xf32>
    %48 = vector.multi_reduction <add>, %47, %cst_27 [2] : vector<2x8x8xf32> to vector<2x8xf32>
    %49 = vector.shape_cast %48 : vector<2x8xf32> to vector<2x8x1xf32>
    %50 = vector.broadcast %49 : vector<2x8x1xf32> to vector<2x8x8xf32>
    %51 = arith.divf %47, %50 : vector<2x8x8xf32>
    "tpu.trace_start"() <{level = 10 : i32, message = "bqk,bkd->bqd"}> : () -> ()
    %cst_28 = arith.constant dense<0.000000e+00> : vector<2x8x8xf32>
    %52 = tpu.matmul %51, %34, %cst_28 {dimension_numbers = #tpu.dot_dimension_numbers<[2], [1], [1], [2], [0, 0, 0, 1, 1, 2], [0], [0]>} : vector<2x8x8xf32>, vector<2x8x8xf32>, vector<2x8x8xf32> -> vector<2x8x8xf32>
    "tpu.trace_stop"() : () -> ()
    %53 = vector.shape_cast %52 : vector<2x8x8xf32> to vector<16x8xf32>
    %54 = vector.extract_strided_slice %27 {offsets = [0, 0], sizes = [8, 32], strides = [1, 1]} : vector<32x32xf32> to vector<8x32xf32>
    %cst_29 = arith.constant dense<0.000000e+00> : vector<16x32xf32>
    %55 = tpu.matmul %53, %54, %cst_29 {dimension_numbers = #tpu.dot_dimension_numbers<[1], [0], [0], [1], [0, 0, 1, 1], [], []>} : vector<16x8xf32>, vector<8x32xf32>, vector<16x32xf32> -> vector<16x32xf32>
    %56 = arith.addf %28, %55 : vector<16x32xf32>
    %57 = vector.extract_strided_slice %15 {offsets = [0, 8], sizes = [16, 8], strides = [1, 1]} : vector<16x32xf32> to vector<16x8xf32>
    %58 = vector.shape_cast %57 : vector<16x8xf32> to vector<2x8x8xf32>
    %59 = vector.extract_strided_slice %19 {offsets = [0, 8], sizes = [16, 8], strides = [1, 1]} : vector<16x32xf32> to vector<16x8xf32>
    %60 = vector.shape_cast %59 : vector<16x8xf32> to vector<2x8x8xf32>
    %61 = vector.extract_strided_slice %8 {offsets = [0, 8], sizes = [16, 8], strides = [1, 1]} : vector<16x32xf32> to vector<16x8xf32>
    %62 = vector.shape_cast %61 : vector<16x8xf32> to vector<2x8x8xf32>
    "tpu.trace_start"() <{level = 10 : i32, message = "bqd,bkd->bqk"}> : () -> ()
    %cst_30 = arith.constant dense<0.000000e+00> : vector<2x8x8xf32>
    %63 = tpu.matmul %58, %60, %cst_30 {dimension_numbers = #tpu.dot_dimension_numbers<[2], [2], [1], [1], [0, 0, 0, 1, 1, 1], [0], [0]>} : vector<2x8x8xf32>, vector<2x8x8xf32>, vector<2x8x8xf32> -> vector<2x8x8xf32>
    %cst_31 = arith.constant -3.40282347E+38 : f32
    "tpu.trace_stop"() : () -> ()
    %64 = vector.shape_cast %25 : vector<1x8x8xi1> to vector<1x8x8xi1>
    %65 = vector.broadcast %64 : vector<1x8x8xi1> to vector<2x8x8xi1>
    %66 = vector.broadcast %cst_31 : f32 to vector<2x8x8xf32>
    %67 = arith.select %65, %63, %66 : vector<2x8x8xi1>, vector<2x8x8xf32>
    %68 = arith.addf %67, %26 : vector<2x8x8xf32>
    %cst_32 = arith.constant dense<0xFF800000> : vector<2x8xf32>
    %69 = vector.multi_reduction <maximumf>, %68, %cst_32 [2] : vector<2x8x8xf32> to vector<2x8xf32>
    %cst_33 = arith.constant 0xFF800000 : f32
    %70 = vector.broadcast %cst_33 : f32 to vector<2x8xf32>
    %71 = arith.maximumf %70, %69 : vector<2x8xf32>
    %72 = vector.shape_cast %71 : vector<2x8xf32> to vector<2x8x1xf32>
    %73 = vector.broadcast %72 : vector<2x8x1xf32> to vector<2x8x8xf32>
    %74 = arith.subf %68, %73 : vector<2x8x8xf32>
    %75 = math.exp %74 : vector<2x8x8xf32>
    %cst_34 = arith.constant dense<0.000000e+00> : vector<2x8xf32>
    %76 = vector.multi_reduction <add>, %75, %cst_34 [2] : vector<2x8x8xf32> to vector<2x8xf32>
    %77 = vector.shape_cast %76 : vector<2x8xf32> to vector<2x8x1xf32>
    %78 = vector.broadcast %77 : vector<2x8x1xf32> to vector<2x8x8xf32>
    %79 = arith.divf %75, %78 : vector<2x8x8xf32>
    "tpu.trace_start"() <{level = 10 : i32, message = "bqk,bkd->bqd"}> : () -> ()
    %cst_35 = arith.constant dense<0.000000e+00> : vector<2x8x8xf32>
    %80 = tpu.matmul %79, %62, %cst_35 {dimension_numbers = #tpu.dot_dimension_numbers<[2], [1], [1], [2], [0, 0, 0, 1, 1, 2], [0], [0]>} : vector<2x8x8xf32>, vector<2x8x8xf32>, vector<2x8x8xf32> -> vector<2x8x8xf32>
    "tpu.trace_stop"() : () -> ()
    %81 = vector.shape_cast %80 : vector<2x8x8xf32> to vector<16x8xf32>
    %82 = vector.extract_strided_slice %27 {offsets = [8, 0], sizes = [8, 32], strides = [1, 1]} : vector<32x32xf32> to vector<8x32xf32>
    %cst_36 = arith.constant dense<0.000000e+00> : vector<16x32xf32>
    %83 = tpu.matmul %81, %82, %cst_36 {dimension_numbers = #tpu.dot_dimension_numbers<[1], [0], [0], [1], [0, 0, 1, 1], [], []>} : vector<16x8xf32>, vector<8x32xf32>, vector<16x32xf32> -> vector<16x32xf32>
    %84 = arith.addf %56, %83 : vector<16x32xf32>
    %85 = vector.extract_strided_slice %15 {offsets = [0, 16], sizes = [16, 8], strides = [1, 1]} : vector<16x32xf32> to vector<16x8xf32>
    %86 = vector.shape_cast %85 : vector<16x8xf32> to vector<2x8x8xf32>
    %87 = vector.extract_strided_slice %19 {offsets = [0, 16], sizes = [16, 8], strides = [1, 1]} : vector<16x32xf32> to vector<16x8xf32>
    %88 = vector.shape_cast %87 : vector<16x8xf32> to vector<2x8x8xf32>
    %89 = vector.extract_strided_slice %8 {offsets = [0, 16], sizes = [16, 8], strides = [1, 1]} : vector<16x32xf32> to vector<16x8xf32>
    %90 = vector.shape_cast %89 : vector<16x8xf32> to vector<2x8x8xf32>
    "tpu.trace_start"() <{level = 10 : i32, message = "bqd,bkd->bqk"}> : () -> ()
    %cst_37 = arith.constant dense<0.000000e+00> : vector<2x8x8xf32>
    %91 = tpu.matmul %86, %88, %cst_37 {dimension_numbers = #tpu.dot_dimension_numbers<[2], [2], [1], [1], [0, 0, 0, 1, 1, 1], [0], [0]>} : vector<2x8x8xf32>, vector<2x8x8xf32>, vector<2x8x8xf32> -> vector<2x8x8xf32>
    %cst_38 = arith.constant -3.40282347E+38 : f32
    "tpu.trace_stop"() : () -> ()
    %92 = vector.shape_cast %25 : vector<1x8x8xi1> to vector<1x8x8xi1>
    %93 = vector.broadcast %92 : vector<1x8x8xi1> to vector<2x8x8xi1>
    %94 = vector.broadcast %cst_38 : f32 to vector<2x8x8xf32>
    %95 = arith.select %93, %91, %94 : vector<2x8x8xi1>, vector<2x8x8xf32>
    %96 = arith.addf %95, %26 : vector<2x8x8xf32>
    %cst_39 = arith.constant dense<0xFF800000> : vector<2x8xf32>
    %97 = vector.multi_reduction <maximumf>, %96, %cst_39 [2] : vector<2x8x8xf32> to vector<2x8xf32>
    %cst_40 = arith.constant 0xFF800000 : f32
    %98 = vector.broadcast %cst_40 : f32 to vector<2x8xf32>
    %99 = arith.maximumf %98, %97 : vector<2x8xf32>
    %100 = vector.shape_cast %99 : vector<2x8xf32> to vector<2x8x1xf32>
    %101 = vector.broadcast %100 : vector<2x8x1xf32> to vector<2x8x8xf32>
    %102 = arith.subf %96, %101 : vector<2x8x8xf32>
    %103 = math.exp %102 : vector<2x8x8xf32>
    %cst_41 = arith.constant dense<0.000000e+00> : vector<2x8xf32>
    %104 = vector.multi_reduction <add>, %103, %cst_41 [2] : vector<2x8x8xf32> to vector<2x8xf32>
    %105 = vector.shape_cast %104 : vector<2x8xf32> to vector<2x8x1xf32>
    %106 = vector.broadcast %105 : vector<2x8x1xf32> to vector<2x8x8xf32>
    %107 = arith.divf %103, %106 : vector<2x8x8xf32>
    "tpu.trace_start"() <{level = 10 : i32, message = "bqk,bkd->bqd"}> : () -> ()
    %cst_42 = arith.constant dense<0.000000e+00> : vector<2x8x8xf32>
    %108 = tpu.matmul %107, %90, %cst_42 {dimension_numbers = #tpu.dot_dimension_numbers<[2], [1], [1], [2], [0, 0, 0, 1, 1, 2], [0], [0]>} : vector<2x8x8xf32>, vector<2x8x8xf32>, vector<2x8x8xf32> -> vector<2x8x8xf32>
    "tpu.trace_stop"() : () -> ()
    %109 = vector.shape_cast %108 : vector<2x8x8xf32> to vector<16x8xf32>
    %110 = vector.extract_strided_slice %27 {offsets = [16, 0], sizes = [8, 32], strides = [1, 1]} : vector<32x32xf32> to vector<8x32xf32>
    %cst_43 = arith.constant dense<0.000000e+00> : vector<16x32xf32>
    %111 = tpu.matmul %109, %110, %cst_43 {dimension_numbers = #tpu.dot_dimension_numbers<[1], [0], [0], [1], [0, 0, 1, 1], [], []>} : vector<16x8xf32>, vector<8x32xf32>, vector<16x32xf32> -> vector<16x32xf32>
    %112 = arith.addf %84, %111 : vector<16x32xf32>
    %113 = vector.extract_strided_slice %15 {offsets = [0, 24], sizes = [16, 8], strides = [1, 1]} : vector<16x32xf32> to vector<16x8xf32>
    %114 = vector.shape_cast %113 : vector<16x8xf32> to vector<2x8x8xf32>
    %115 = vector.extract_strided_slice %19 {offsets = [0, 24], sizes = [16, 8], strides = [1, 1]} : vector<16x32xf32> to vector<16x8xf32>
    %116 = vector.shape_cast %115 : vector<16x8xf32> to vector<2x8x8xf32>
    %117 = vector.extract_strided_slice %8 {offsets = [0, 24], sizes = [16, 8], strides = [1, 1]} : vector<16x32xf32> to vector<16x8xf32>
    %118 = vector.shape_cast %117 : vector<16x8xf32> to vector<2x8x8xf32>
    "tpu.trace_start"() <{level = 10 : i32, message = "bqd,bkd->bqk"}> : () -> ()
    %cst_44 = arith.constant dense<0.000000e+00> : vector<2x8x8xf32>
    %119 = tpu.matmul %114, %116, %cst_44 {dimension_numbers = #tpu.dot_dimension_numbers<[2], [2], [1], [1], [0, 0, 0, 1, 1, 1], [0], [0]>} : vector<2x8x8xf32>, vector<2x8x8xf32>, vector<2x8x8xf32> -> vector<2x8x8xf32>
    %cst_45 = arith.constant -3.40282347E+38 : f32
    "tpu.trace_stop"() : () -> ()
    %120 = vector.shape_cast %25 : vector<1x8x8xi1> to vector<1x8x8xi1>
    %121 = vector.broadcast %120 : vector<1x8x8xi1> to vector<2x8x8xi1>
    %122 = vector.broadcast %cst_45 : f32 to vector<2x8x8xf32>
    %123 = arith.select %121, %119, %122 : vector<2x8x8xi1>, vector<2x8x8xf32>
    %124 = arith.addf %123, %26 : vector<2x8x8xf32>
    %cst_46 = arith.constant dense<0xFF800000> : vector<2x8xf32>
    %125 = vector.multi_reduction <maximumf>, %124, %cst_46 [2] : vector<2x8x8xf32> to vector<2x8xf32>
    %cst_47 = arith.constant 0xFF800000 : f32
    %126 = vector.broadcast %cst_47 : f32 to vector<2x8xf32>
    %127 = arith.maximumf %126, %125 : vector<2x8xf32>
    %128 = vector.shape_cast %127 : vector<2x8xf32> to vector<2x8x1xf32>
    %129 = vector.broadcast %128 : vector<2x8x1xf32> to vector<2x8x8xf32>
    %130 = arith.subf %124, %129 : vector<2x8x8xf32>
    %131 = math.exp %130 : vector<2x8x8xf32>
    %cst_48 = arith.constant dense<0.000000e+00> : vector<2x8xf32>
    %132 = vector.multi_reduction <add>, %131, %cst_48 [2] : vector<2x8x8xf32> to vector<2x8xf32>
    %133 = vector.shape_cast %132 : vector<2x8xf32> to vector<2x8x1xf32>
    %134 = vector.broadcast %133 : vector<2x8x1xf32> to vector<2x8x8xf32>
    %135 = arith.divf %131, %134 : vector<2x8x8xf32>
    "tpu.trace_start"() <{level = 10 : i32, message = "bqk,bkd->bqd"}> : () -> ()
    %cst_49 = arith.constant dense<0.000000e+00> : vector<2x8x8xf32>
    %136 = tpu.matmul %135, %118, %cst_49 {dimension_numbers = #tpu.dot_dimension_numbers<[2], [1], [1], [2], [0, 0, 0, 1, 1, 2], [0], [0]>} : vector<2x8x8xf32>, vector<2x8x8xf32>, vector<2x8x8xf32> -> vector<2x8x8xf32>
    "tpu.trace_stop"() : () -> ()
    %137 = vector.shape_cast %136 : vector<2x8x8xf32> to vector<16x8xf32>
    %138 = vector.extract_strided_slice %27 {offsets = [24, 0], sizes = [8, 32], strides = [1, 1]} : vector<32x32xf32> to vector<8x32xf32>
    %cst_50 = arith.constant dense<0.000000e+00> : vector<16x32xf32>
    %139 = tpu.matmul %137, %138, %cst_50 {dimension_numbers = #tpu.dot_dimension_numbers<[1], [0], [0], [1], [0, 0, 1, 1], [], []>} : vector<16x8xf32>, vector<8x32xf32>, vector<16x32xf32> -> vector<16x32xf32>
    %140 = arith.addf %112, %139 : vector<16x32xf32>
    %c0_51 = arith.constant 0 : index
    %c0_52 = arith.constant 0 : index
    %141 = vector.load %arg4[%c0_51, %c0_52] : memref<1x32xf32, #tpu.memory_space<vmem>>, vector<1x32xf32>
    %142 = vector.broadcast %141 : vector<1x32xf32> to vector<16x32xf32>
    %143 = arith.addf %140, %142 : vector<16x32xf32>
    %c0_53 = arith.constant 0 : index
    %c0_54 = arith.constant 0 : index
    %144 = vector.load %arg9[%c0_53, %c0_54] : memref<16x32xf32, #tpu.memory_space<vmem>>, vector<16x32xf32>
    tpu.vector_store %arg9[%c0_53, %c0_54], %143 {strides = array<i32>} : memref<16x32xf32, #tpu.memory_space<vmem>>, vector<16x32xf32>,
    return
  }
}

</mosaic_0001>

<llo_original>
// kernel: self_attention_forward.1
$region0: #{self_attention_forward.1}
  #allocation0 [shape = 'u32[]', space=smem, size = 0x4, offset = 0x4, fixed_abs, tag = 'smem constant byte address 0x4 - core index']
  #allocation1 [shape = 'u32[144,128]{1,0:T(1,128)}', space=vmem, size = 0x12000, scoped, tag = 'internal scratch']
  %s0 = inlined_call_operand.hbm [shape: f32[16,32], index: 0, kind: input, shape index: {}]
  %s1 = inlined_call_operand.hbm [shape: f32[32,96], index: 1, kind: input, shape index: {}]
  %s2 = inlined_call_operand.vmem [shape: f32[1,96], index: 2, kind: input, shape index: {}]
  %s3 = inlined_call_operand.hbm [shape: f32[32,32], index: 3, kind: input, shape index: {}]
  %s4 = inlined_call_operand.vmem [shape: f32[1,32], index: 4, kind: input, shape index: {}]
  %s5 = inlined_call_operand.hbm [shape: f32[16,32], index: 5, kind: input, shape index: {}]
  %s6 = inlined_call_operand.hbm [shape: f32[16,32], index: 6, kind: input, shape index: {}]
  %s7 = inlined_call_operand.vmem [shape: f32[32,32], index: 7, kind: input, shape index: {}]
  %s8 = inlined_call_operand.hbm [shape: f32[2,8,8], index: 8, kind: input, shape index: {}]
  %s9 = inlined_call_operand.hbm [shape: f32[16,32], index: 9, kind: output, shape index: {0}]
  %s10 = inlined_call_operand.vmem [shape: f32[16,32], index: 10, kind: output, shape index: {1}]
  %s11 = inlined_call_operand.vmem [shape: f32[16,32], index: 11, kind: output, shape index: {2}]
  %12 = xla_tuple %s9, %s10, %s11
  %s13 = sld [smem:[#allocation0]]
  $region86: #{self_attention_forward.1} parent=0
    _
  %s15 = ssub.s32 1, %s13
  %s16 = scalar_select 0, %s15, %s13
  $region1: #{self_attention_forward.1} parent=0
    #allocation2 [shape = 'u8[8192]{0}', space=vmem, size = 0x2000, scoped, tag = 'input window, operand 0, single buffered']
    #allocation3 [shape = 's32[1]{0}', space=sflag, size = 0x4, scoped, tag = 'scoped memory for self_attention_forward.1']
    #allocation4 [shape = 's32[1]{0}', space=sflag, size = 0x4, scoped, tag = 'scoped memory for self_attention_forward.1']
    #allocation5 [shape = 'u8[16384]{0}', space=vmem, size = 0x4000, scoped, tag = 'input window, operand 1, single buffered']
    #allocation6 [shape = 's32[1]{0}', space=sflag, size = 0x4, scoped, tag = 'scoped memory for self_attention_forward.1']
    #allocation7 [shape = 'u8[16384]{0}', space=vmem, size = 0x4000, scoped, tag = 'input window, operand 3, single buffered']
    #allocation8 [shape = 'u8[8192]{0}', space=vmem, size = 0x2000, scoped, tag = 'input window, operand 5, single buffered']
    #allocation9 [shape = 's32[1]{0}', space=sflag, size = 0x4, scoped, tag = 'scoped memory for self_attention_forward.1']
    #allocation10 [shape = 'u8[8192]{0}', space=vmem, size = 0x2000, scoped, tag = 'input window, operand 6, single buffered']
    #allocation11 [shape = 'u8[8192]{0}', space=vmem, size = 0x2000, scoped, tag = 'input window, operand 8, single buffered']
    #allocation12 [shape = 's32[1]{0}', space=sflag, size = 0x4, scoped, tag = 'scoped memory for self_attention_forward.1']
    #allocation13 [shape = 'u8[8192]{0}', space=vmem, size = 0x2000, scoped, tag = 'output window, operand 0, single buffered']
    %17 = vsyncpa [#allocation3], 0
    %18 = vsyncpa [#allocation6], 0
    %19 = vsyncpa [#allocation9], 0
    %20 = vsyncpa [#allocation12], 0
    %21 = vsyncpa [#allocation4], 0
    // Predicated region
    $region2: #{self_attention_forward.1} parent=1 // pred_check
      _
    $region3: #{self_attention_forward.1} parent=1 // pred_check_branch
      %23 = sbr.rel (0) target = $region5
    $region4: #{self_attention_forward.1} parent=1 // pred_region
      %s25 = ssub.s32 256, 256
      %26 = vsyncadd [#allocation3], %s25
      %s27 = sshll.u32 [#allocation2], 4
      %s28 = int_to_ptr.vmem [resolvable:$true] %s27
      %33 = dma.hbm_to_vmem [thread:$0]  %s0, 256, %s28, [#allocation3], 128, 128, 8
    $region5: #{self_attention_forward.1} parent=1 // pred_fallthru
      _
    // Predicated region
    $region6: #{self_attention_forward.1} parent=1 // pred_check
      _
    $region7: #{self_attention_forward.1} parent=1 // pred_check_branch
      %35 = sbr.rel (0) target = $region9
    $region8: #{self_attention_forward.1} parent=1 // pred_region
      %s37 = ssub.s32 512, 512
      %38 = vsyncadd [#allocation6], %s37
      %s39 = sshll.u32 [#allocation5], 4
      %s40 = int_to_ptr.vmem [resolvable:$true] %s39
      %45 = dma.hbm_to_vmem [thread:$0]  %s1, 512, %s40, [#allocation6], 128, 128, 8
    $region9: #{self_attention_forward.1} parent=1 // pred_fallthru
      _
    // Predicated region
    $region10: #{self_attention_forward.1} parent=1 // pred_check
      _
    $region11: #{self_attention_forward.1} parent=1 // pred_check_branch
      %47 = sbr.rel (0) target = $region13
    $region12: #{self_attention_forward.1} parent=1 // pred_region
      _
    $region13: #{self_attention_forward.1} parent=1 // pred_fallthru
      _
    // Predicated region
    $region14: #{self_attention_forward.1} parent=1 // pred_check
      _
    $region15: #{self_attention_forward.1} parent=1 // pred_check_branch
      %49 = sbr.rel (0) target = $region17
    $region16: #{self_attention_forward.1} parent=1 // pred_region
      %s51 = ssub.s32 512, 512
      %52 = vsyncadd [#allocation6], %s51
      %s53 = sshll.u32 [#allocation7], 4
      %s54 = int_to_ptr.vmem [resolvable:$true] %s53
      %59 = dma.hbm_to_vmem [thread:$0]  %s3, 512, %s54, [#allocation6], 128, 128, 8
    $region17: #{self_attention_forward.1} parent=1 // pred_fallthru
      _
    // Predicated region
    $region18: #{self_attention_forward.1} parent=1 // pred_check
      _
    $region19: #{self_attention_forward.1} parent=1 // pred_check_branch
      %61 = sbr.rel (0) target = $region21
    $region20: #{self_attention_forward.1} parent=1 // pred_region
      _
    $region21: #{self_attention_forward.1} parent=1 // pred_fallthru
      _
    // Predicated region
    $region22: #{self_attention_forward.1} parent=1 // pred_check
      _
    $region23: #{self_attention_forward.1} parent=1 // pred_check_branch
      %63 = sbr.rel (0) target = $region25
    $region24: #{self_attention_forward.1} parent=1 // pred_region
      %s65 = ssub.s32 256, 256
      %66 = vsyncadd [#allocation9], %s65
      %s67 = sshll.u32 [#allocation8], 4
      %s68 = int_to_ptr.vmem [resolvable:$true] %s67
      %73 = dma.hbm_to_vmem [thread:$0]  %s5, 256, %s68, [#allocation9], 128, 128, 8
    $region25: #{self_attention_forward.1} parent=1 // pred_fallthru
      _
    // Predicated region
    $region26: #{self_attention_forward.1} parent=1 // pred_check
      _
    $region27: #{self_attention_forward.1} parent=1 // pred_check_branch
      %75 = sbr.rel (0) target = $region29
    $region28: #{self_attention_forward.1} parent=1 // pred_region
      %s77 = ssub.s32 256, 256
      %78 = vsyncadd [#allocation9], %s77
      %s79 = sshll.u32 [#allocation10], 4
      %s80 = int_to_ptr.vmem [resolvable:$true] %s79
      %85 = dma.hbm_to_vmem [thread:$0]  %s6, 256, %s80, [#allocation9], 128, 128, 8
    $region29: #{self_attention_forward.1} parent=1 // pred_fallthru
      _
    // Predicated region
    $region30: #{self_attention_forward.1} parent=1 // pred_check
      _
    $region31: #{self_attention_forward.1} parent=1 // pred_check_branch
      %87 = sbr.rel (0) target = $region33
    $region32: #{self_attention_forward.1} parent=1 // pred_region
      _
    $region33: #{self_attention_forward.1} parent=1 // pred_fallthru
      _
    // Predicated region
    $region34: #{self_attention_forward.1} parent=1 // pred_check
      _
    $region35: #{self_attention_forward.1} parent=1 // pred_check_branch
      %89 = sbr.rel (0) target = $region37
    $region36: #{self_attention_forward.1} parent=1 // pred_region
      %s91 = ssub.s32 256, 256
      %92 = vsyncadd [#allocation12], %s91
      %s93 = sshll.u32 [#allocation11], 4
      %s94 = int_to_ptr.vmem [resolvable:$true] %s93
      %99 = dma.hbm_to_vmem [thread:$0]  %s8, 256, %s94, [#allocation12], 128, 128, 8
    $region37: #{self_attention_forward.1} parent=1 // pred_fallthru
      _
    // Predicated region
    $region38: #{self_attention_forward.1} parent=1 // pred_check
      _
    $region39: #{self_attention_forward.1} parent=1 // pred_check_branch
      %101 = sbr.rel (0) target = $region41
    $region40: #{self_attention_forward.1} parent=1 // pred_region
      %102 = dma.done [#allocation3], 256
    $region41: #{self_attention_forward.1} parent=1 // pred_fallthru
      _
    // Predicated region
    $region42: #{self_attention_forward.1} parent=1 // pred_check
      _
    $region43: #{self_attention_forward.1} parent=1 // pred_check_branch
      %104 = sbr.rel (0) target = $region45
    $region44: #{self_attention_forward.1} parent=1 // pred_region
      %105 = dma.done [#allocation6], 512
    $region45: #{self_attention_forward.1} parent=1 // pred_fallthru
      _
    // Predicated region
    $region46: #{self_attention_forward.1} parent=1 // pred_check
      _
    $region47: #{self_attention_forward.1} parent=1 // pred_check_branch
      %107 = sbr.rel (0) target = $region49
    $region48: #{self_attention_forward.1} parent=1 // pred_region
      %108 = dma.done [#allocation6], 512
    $region49: #{self_attention_forward.1} parent=1 // pred_fallthru
      _
    // Predicated region
    $region50: #{self_attention_forward.1} parent=1 // pred_check
      _
    $region51: #{self_attention_forward.1} parent=1 // pred_check_branch
      %110 = sbr.rel (0) target = $region53
    $region52: #{self_attention_forward.1} parent=1 // pred_region
      %111 = dma.done [#allocation9], 256
    $region53: #{self_attention_forward.1} parent=1 // pred_fallthru
      _
    // Predicated region
    $region54: #{self_attention_forward.1} parent=1 // pred_check
      _
    $region55: #{self_attention_forward.1} parent=1 // pred_check_branch
      %113 = sbr.rel (0) target = $region57
    $region56: #{self_attention_forward.1} parent=1 // pred_region
      %114 = dma.done [#allocation9], 256
    $region57: #{self_attention_forward.1} parent=1 // pred_fallthru
      _
    // Predicated region
    $region58: #{self_attention_forward.1} parent=1 // pred_check
      _
    $region59: #{self_attention_forward.1} parent=1 // pred_check_branch
      %116 = sbr.rel (0) target = $region61
    $region60: #{self_attention_forward.1} parent=1 // pred_region
      %117 = dma.done [#allocation12], 256
    $region61: #{self_attention_forward.1} parent=1 // pred_fallthru
      _
    %v118 = vld [vmem:[#allocation2] sm:$0xff]
    %v119 = vld [vmem:[#allocation2 + $0x8] sm:$0xff]
    %v120 = vld [vmem:[#allocation5] sm:$0xff]
    %v121 = vld [vmem:[#allocation5 + $0x8] sm:$0xff]
    %v122 = vld [vmem:[#allocation5 + $0x10] sm:$0xff]
    %v123 = vld [vmem:[#allocation5 + $0x18] sm:$0xff]
    %v124 = vld [vmem:[%s2] sm:$0x1]
    %v126 = vlaneseq
    %v127 = vshrl.u32 %v126, 7
    %v128 = vsub.s32 0, %v127
    %v129 = vrot.slane %v124, %v128
    %vm131 = vcmask 261120
    %v133 = vsel %vm131, %v118, 0
    %v136 = vsel %vm131, %v119, 0
    %138 = vmatprep.subr.mxu0 0.0
    %139 = vmatpush1.msra.mxu0 %v120
    %140 = vmatprep.subr.mxu0 0.0
    %141 = vmatpush1.msra.mxu0 %v121
    %142 = vmatprep.subr.mxu0 0.0
    %143 = vmatpush1.msra.mxu0 %v122
    %144 = vmatprep.subr.mxu0 0.0
    %145 = vmatpush1.msra.mxu0 %v123
    %146 = vmatprep.subr.mxu0 0.0
    %147 = vmatpush1.msra.mxu0 0.0
    %148 = vmatprep.subr.mxu0 0.0
    %149 = vmatpush1.msra.mxu0 0.0
    %150 = vmatprep.subr.mxu0 0.0
    %151 = vmatpush1.msra.mxu0 0.0
    %152 = vmatprep.subr.mxu0 0.0
    %153 = vmatpush1.msra.mxu0 0.0
    %154 = vmatprep.subr.mxu0 0.0
    %155 = vmatpush1.msra.mxu0 0.0
    %156 = vmatprep.subr.mxu0 0.0
    %157 = vmatpush1.msra.mxu0 0.0
    %158 = vmatprep.subr.mxu0 0.0
    %159 = vmatpush1.msra.mxu0 0.0
    %160 = vmatprep.subr.mxu0 0.0
    %161 = vmatpush1.msra.mxu0 0.0
    %162 = vmatprep.subr.mxu0 0.0
    %163 = vmatpush1.msra.mxu0 0.0
    %164 = vmatprep.subr.mxu0 0.0
    %165 = vmatpush1.msra.mxu0 0.0
    %166 = vmatprep.subr.mxu0 0.0
    %167 = vmatpush1.msra.mxu0 0.0
    %168 = vmatprep.subr.mxu0 0.0
    %169 = vmatpush1.msra.mxu0 0.0
    %170 = vmatprep.subr.mxu0 0.0
    %171 = vmatpush1.msra.mxu0 0.0
    %172 = vmatprep.subr.mxu0 0.0
    %173 = vmatpush1.msra.mxu0 0.0
    %174 = vmatprep.subr.mxu0 0.0
    %175 = vmatpush1.msra.mxu0 0.0
    %176 = vmatprep.subr.mxu0 0.0
    %177 = vmatpush1.msra.mxu0 0.0
    %178 = vmatprep.subr.mxu0 0.0
    %179 = vmatpush1.msra.mxu0 0.0
    %180 = vmatprep.subr.mxu0 0.0
    %181 = vmatpush1.msra.mxu0 0.0
    %182 = vmatprep.subr.mxu0 0.0
    %183 = vmatpush1.msra.mxu0 0.0
    %184 = vmatprep.subr.mxu0 0.0
    %185 = vmatpush1.msra.mxu0 0.0
    %186 = vmatprep.subr.mxu0 0.0
    %187 = vmatpush1.msra.mxu0 0.0
    %188 = vmatprep.subr.mxu0 0.0
    %189 = vmatpush1.msra.mxu0 0.0
    %190 = vmatprep.subr.mxu0 0.0
    %191 = vmatpush1.msra.mxu0 0.0
    %192 = vmatprep.subr.mxu0 0.0
    %193 = vmatpush1.msra.mxu0 0.0
    %194 = vmatprep.subr.mxu0 0.0
    %195 = vmatpush1.msra.mxu0 0.0
    %196 = vmatprep.subr.mxu0 0.0
    %197 = vmatpush1.msra.mxu0 0.0
    %198 = vmatprep.subr.mxu0 0.0
    %199 = vmatpush1.msra.mxu0 0.0
    %200 = vmatprep.subr.mxu0 0.0
    %201 = vmatpush1.msra.mxu0 0.0
    %202 = vmatprep.mubr.f32.mxu0 0.0
    %203 = vmatmul.mubr.f32.gmra.mrb[0].mxu0 %v133
    %v204 = vpop.f32.mrb[0].mxu0
    %v205 = vadd.f32 %v129, %v204
    %v206 = vpop.f32.mrb[0].mxu0
    %207 = vmatprep.mubr.f32.mxu0 0.0
    %208 = vmatmul.mubr.f32.gmra.mrb[0].mxu0 %v136
    %v209 = vpop.f32.mrb[0].mxu0
    %v210 = vadd.f32 %v129, %v209
    %v211 = vpop.f32.mrb[0].mxu0
    %212 = vdwg.mxu0
    %v213 = vld [vmem:[#allocation8] sm:$0xff]
    %v214 = vld [vmem:[#allocation8 + $0x8] sm:$0xff]
    %v215 = vld [vmem:[#allocation10] sm:$0xff]
    %v216 = vld [vmem:[#allocation10 + $0x8] sm:$0xff]
    %v217 = vld [vmem:[%s7] sm:$0xff]
    %v218 = vld [vmem:[%s7 + $0x8] sm:$0xff]
    %v219 = vld [vmem:[%s7 + $0x10] sm:$0xff]
    %v220 = vld [vmem:[%s7 + $0x18] sm:$0xff]
    %v221 = vmul.f32 %v213, %v205
    %v222 = vmul.f32 %v214, %v210
    %v224 = vsel %vm131, %v205, 0
    %v227 = vsel %vm131, %v210, 0
    %229 = vmatprep.subr.mxu0 0.0
    %230 = vmatpush1.msra.mxu0 %v217
    %231 = vmatprep.subr.mxu0 0.0
    %232 = vmatpush1.msra.mxu0 %v218
    %233 = vmatprep.subr.mxu0 0.0
    %234 = vmatpush1.msra.mxu0 %v219
    %235 = vmatprep.subr.mxu0 0.0
    %236 = vmatpush1.msra.mxu0 %v220
    %237 = vmatprep.subr.mxu0 0.0
    %238 = vmatpush1.msra.mxu0 0.0
    %239 = vmatprep.subr.mxu0 0.0
    %240 = vmatpush1.msra.mxu0 0.0
    %241 = vmatprep.subr.mxu0 0.0
    %242 = vmatpush1.msra.mxu0 0.0
    %243 = vmatprep.subr.mxu0 0.0
    %244 = vmatpush1.msra.mxu0 0.0
    %245 = vmatprep.subr.mxu0 0.0
    %246 = vmatpush1.msra.mxu0 0.0
    %247 = vmatprep.subr.mxu0 0.0
    %248 = vmatpush1.msra.mxu0 0.0
    %249 = vmatprep.subr.mxu0 0.0
    %250 = vmatpush1.msra.mxu0 0.0
    %251 = vmatprep.subr.mxu0 0.0
    %252 = vmatpush1.msra.mxu0 0.0
    %253 = vmatprep.subr.mxu0 0.0
    %254 = vmatpush1.msra.mxu0 0.0
    %255 = vmatprep.subr.mxu0 0.0
    %256 = vmatpush1.msra.mxu0 0.0
    %257 = vmatprep.subr.mxu0 0.0
    %258 = vmatpush1.msra.mxu0 0.0
    %259 = vmatprep.subr.mxu0 0.0
    %260 = vmatpush1.msra.mxu0 0.0
    %261 = vmatprep.subr.mxu0 0.0
    %262 = vmatpush1.msra.mxu0 0.0
    %263 = vmatprep.subr.mxu0 0.0
    %264 = vmatpush1.msra.mxu0 0.0
    %265 = vmatprep.subr.mxu0 0.0
    %266 = vmatpush1.msra.mxu0 0.0
    %267 = vmatprep.subr.mxu0 0.0
    %268 = vmatpush1.msra.mxu0 0.0
    %269 = vmatprep.subr.mxu0 0.0
    %270 = vmatpush1.msra.mxu0 0.0
    %271 = vmatprep.subr.mxu0 0.0
    %272 = vmatpush1.msra.mxu0 0.0
    %273 = vmatprep.subr.mxu0 0.0
    %274 = vmatpush1.msra.mxu0 0.0
    %275 = vmatprep.subr.mxu0 0.0
    %276 = vmatpush1.msra.mxu0 0.0
    %277 = vmatprep.subr.mxu0 0.0
    %278 = vmatpush1.msra.mxu0 0.0
    %279 = vmatprep.subr.mxu0 0.0
    %280 = vmatpush1.msra.mxu0 0.0
    %281 = vmatprep.subr.mxu0 0.0
    %282 = vmatpush1.msra.mxu0 0.0
    %283 = vmatprep.subr.mxu0 0.0
    %284 = vmatpush1.msra.mxu0 0.0
    %285 = vmatprep.subr.mxu0 0.0
    %286 = vmatpush1.msra.mxu0 0.0
    %287 = vmatprep.subr.mxu0 0.0
    %288 = vmatpush1.msra.mxu0 0.0
    %289 = vmatprep.subr.mxu0 0.0
    %290 = vmatpush1.msra.mxu0 0.0
    %291 = vmatprep.subr.mxu0 0.0
    %292 = vmatpush1.msra.mxu0 0.0
    %293 = vmatprep.mubr.f32.mxu0 0.0
    %294 = vmatmul.mubr.f32.gmra.mrb[0].mxu0 %v224
    %v295 = vpop.f32.mrb[0].mxu0
    %v296 = vadd.f32 0.0, %v295
    %v297 = vpop.f32.mrb[0].mxu0
    %298 = vmatprep.mubr.f32.mxu0 0.0
    %299 = vmatmul.mubr.f32.gmra.mrb[0].mxu0 %v227
    %v300 = vpop.f32.mrb[0].mxu0
    %v301 = vadd.f32 0.0, %v300
    %v302 = vpop.f32.mrb[0].mxu0
    %303 = vdwg.mxu0
    %v304 = vmul.f32 %v215, %v296
    %v305 = vmul.f32 %v216, %v301
    %v306 = vadd.f32 %v221, %v304
    %v307 = vadd.f32 %v222, %v305
    %308 = vrot.lane.b32.xlu0 %v205, 96
    %v309 = vpop.permute.xlu0 %308
    %310 = vrot.lane.b32.xlu0 %v210, 96
    %v311 = vpop.permute.xlu0 %310
    %v314 = vmul.f32 %v213, %v309
    %v315 = vmul.f32 %v214, %v311
    %v316 = vsel %vm131, %v309, 0
    %v318 = vsel %vm131, %v311, 0
    %320 = vmatprep.subr.mxu0 0.0
    %321 = vmatpush1.msra.mxu0 %v217
    %322 = vmatprep.subr.mxu0 0.0
    %323 = vmatpush1.msra.mxu0 %v218
    %324 = vmatprep.subr.mxu0 0.0
    %325 = vmatpush1.msra.mxu0 %v219
    %326 = vmatprep.subr.mxu0 0.0
    %327 = vmatpush1.msra.mxu0 %v220
    %328 = vmatprep.subr.mxu0 0.0
    %329 = vmatpush1.msra.mxu0 0.0
    %330 = vmatprep.subr.mxu0 0.0
    %331 = vmatpush1.msra.mxu0 0.0
    %332 = vmatprep.subr.mxu0 0.0
    %333 = vmatpush1.msra.mxu0 0.0
    %334 = vmatprep.subr.mxu0 0.0
    %335 = vmatpush1.msra.mxu0 0.0
    %336 = vmatprep.subr.mxu0 0.0
    %337 = vmatpush1.msra.mxu0 0.0
    %338 = vmatprep.subr.mxu0 0.0
    %339 = vmatpush1.msra.mxu0 0.0
    %340 = vmatprep.subr.mxu0 0.0
    %341 = vmatpush1.msra.mxu0 0.0
    %342 = vmatprep.subr.mxu0 0.0
    %343 = vmatpush1.msra.mxu0 0.0
    %344 = vmatprep.subr.mxu0 0.0
    %345 = vmatpush1.msra.mxu0 0.0
    %346 = vmatprep.subr.mxu0 0.0
    %347 = vmatpush1.msra.mxu0 0.0
    %348 = vmatprep.subr.mxu0 0.0
    %349 = vmatpush1.msra.mxu0 0.0
    %350 = vmatprep.subr.mxu0 0.0
    %351 = vmatpush1.msra.mxu0 0.0
    %352 = vmatprep.subr.mxu0 0.0
    %353 = vmatpush1.msra.mxu0 0.0
    %354 = vmatprep.subr.mxu0 0.0
    %355 = vmatpush1.msra.mxu0 0.0
    %356 = vmatprep.subr.mxu0 0.0
    %357 = vmatpush1.msra.mxu0 0.0
    %358 = vmatprep.subr.mxu0 0.0
    %359 = vmatpush1.msra.mxu0 0.0
    %360 = vmatprep.subr.mxu0 0.0
    %361 = vmatpush1.msra.mxu0 0.0
    %362 = vmatprep.subr.mxu0 0.0
    %363 = vmatpush1.msra.mxu0 0.0
    %364 = vmatprep.subr.mxu0 0.0
    %365 = vmatpush1.msra.mxu0 0.0
    %366 = vmatprep.subr.mxu0 0.0
    %367 = vmatpush1.msra.mxu0 0.0
    %368 = vmatprep.subr.mxu0 0.0
    %369 = vmatpush1.msra.mxu0 0.0
    %370 = vmatprep.subr.mxu0 0.0
    %371 = vmatpush1.msra.mxu0 0.0
    %372 = vmatprep.subr.mxu0 0.0
    %373 = vmatpush1.msra.mxu0 0.0
    %374 = vmatprep.subr.mxu0 0.0
    %375 = vmatpush1.msra.mxu0 0.0
    %376 = vmatprep.subr.mxu0 0.0
    %377 = vmatpush1.msra.mxu0 0.0
    %378 = vmatprep.subr.mxu0 0.0
    %379 = vmatpush1.msra.mxu0 0.0
    %380 = vmatprep.subr.mxu0 0.0
    %381 = vmatpush1.msra.mxu0 0.0
    %382 = vmatprep.subr.mxu0 0.0
    %383 = vmatpush1.msra.mxu0 0.0
    %384 = vmatprep.mubr.f32.mxu0 0.0
    %385 = vmatmul.mubr.f32.gmra.mrb[0].mxu0 %v316
    %v386 = vpop.f32.mrb[0].mxu0
    %v387 = vadd.f32 0.0, %v386
    %v388 = vpop.f32.mrb[0].mxu0
    %389 = vmatprep.mubr.f32.mxu0 0.0
    %390 = vmatmul.mubr.f32.gmra.mrb[0].mxu0 %v318
    %v391 = vpop.f32.mrb[0].mxu0
    %v392 = vadd.f32 0.0, %v391
    %v393 = vpop.f32.mrb[0].mxu0
    %394 = vdwg.mxu0
    %v395 = vmul.f32 %v215, %v387
    %v396 = vmul.f32 %v216, %v392
    %v397 = vadd.f32 %v314, %v395
    %v398 = vadd.f32 %v315, %v396
    %399 = vst.msk [vmem:[%s10] sm:$0xff] %vm131, %v397
    %400 = vst.msk [vmem:[%s10 + $0x8] sm:$0xff] %vm131, %v398
    %401 = vrot.lane.b32.xlu0 %v205, 64
    %v402 = vpop.permute.xlu0 %401
    %403 = vrot.lane.b32.xlu0 %v210, 64
    %v404 = vpop.permute.xlu0 %403
    %407 = vst.msk [vmem:[%s11] sm:$0xff] %vm131, %v402
    %408 = vst.msk [vmem:[%s11 + $0x8] sm:$0xff] %vm131, %v404
    %v409 = vlaneseq
    %v410 = vshrl.u32 %v409, 7
    %v411 = vlaneseq
    %v412 = vand.u32 %v411, 127
    %vm413 = vcmp.ge.s32.totalorder %v410, %v412
    %v414 = vld [vmem:[#allocation11] sm:$0xff]
    %v415 = vld [vmem:[#allocation11 + $0x8] sm:$0xff]
    %v416 = vld [vmem:[#allocation7] sm:$0xff]
    %v417 = vld [vmem:[#allocation7 + $0x8] sm:$0xff]
    %v418 = vld [vmem:[#allocation7 + $0x10] sm:$0xff]
    %v419 = vld [vmem:[#allocation7 + $0x18] sm:$0xff]
    %vm420 = vcmask 64512
    %v422 = vsel %vm420, %v306, 0
    %v425 = vsel %vm420, %v397, 0
    %427 = vmatprep.subr.mxu0 0.0
    %428 = vmatpush1.xpose.msra.mxu0 %v425
    %429 = vmatprep.subr.mxu0 0.0
    %430 = vmatpush1.xpose.msra.mxu0 0.0
    %431 = vmatprep.subr.mxu0 0.0
    %432 = vmatpush1.xpose.msra.mxu0 0.0
    %433 = vmatprep.subr.mxu0 0.0
    %434 = vmatpush1.xpose.msra.mxu0 0.0
    %435 = vmatprep.subr.mxu0 0.0
    %436 = vmatpush1.xpose.msra.mxu0 0.0
    %437 = vmatprep.subr.mxu0 0.0
    %438 = vmatpush1.xpose.msra.mxu0 0.0
    %439 = vmatprep.subr.mxu0 0.0
    %440 = vmatpush1.xpose.msra.mxu0 0.0
    %441 = vmatprep.subr.mxu0 0.0
    %442 = vmatpush1.xpose.msra.mxu0 0.0
    %443 = vmatprep.subr.mxu0 0.0
    %444 = vmatpush1.xpose.msra.mxu0 0.0
    %445 = vmatprep.subr.mxu0 0.0
    %446 = vmatpush1.xpose.msra.mxu0 0.0
    %447 = vmatprep.subr.mxu0 0.0
    %448 = vmatpush1.xpose.msra.mxu0 0.0
    %449 = vmatprep.subr.mxu0 0.0
    %450 = vmatpush1.xpose.msra.mxu0 0.0
    %451 = vmatprep.subr.mxu0 0.0
    %452 = vmatpush1.xpose.msra.mxu0 0.0
    %453 = vmatprep.subr.mxu0 0.0
    %454 = vmatpush1.xpose.msra.mxu0 0.0
    %455 = vmatprep.subr.mxu0 0.0
    %456 = vmatpush1.xpose.msra.mxu0 0.0
    %457 = vmatprep.subr.mxu0 0.0
    %458 = vmatpush1.xpose.msra.mxu0 0.0
    %459 = vmatprep.subr.mxu0 0.0
    %460 = vmatpush1.xpose.msra.mxu0 0.0
    %461 = vmatprep.subr.mxu0 0.0
    %462 = vmatpush1.xpose.msra.mxu0 0.0
    %463 = vmatprep.subr.mxu0 0.0
    %464 = vmatpush1.xpose.msra.mxu0 0.0
    %465 = vmatprep.subr.mxu0 0.0
    %466 = vmatpush1.xpose.msra.mxu0 0.0
    %467 = vmatprep.subr.mxu0 0.0
    %468 = vmatpush1.xpose.msra.mxu0 0.0
    %469 = vmatprep.subr.mxu0 0.0
    %470 = vmatpush1.xpose.msra.mxu0 0.0
    %471 = vmatprep.subr.mxu0 0.0
    %472 = vmatpush1.xpose.msra.mxu0 0.0
    %473 = vmatprep.subr.mxu0 0.0
    %474 = vmatpush1.xpose.msra.mxu0 0.0
    %475 = vmatprep.subr.mxu0 0.0
    %476 = vmatpush1.xpose.msra.mxu0 0.0
    %477 = vmatprep.subr.mxu0 0.0
    %478 = vmatpush1.xpose.msra.mxu0 0.0
    %479 = vmatprep.subr.mxu0 0.0
    %480 = vmatpush1.xpose.msra.mxu0 0.0
    %481 = vmatprep.subr.mxu0 0.0
    %482 = vmatpush1.xpose.msra.mxu0 0.0
    %483 = vmatprep.subr.mxu0 0.0
    %484 = vmatpush1.xpose.msra.mxu0 0.0
    %485 = vmatprep.subr.mxu0 0.0
    %486 = vmatpush1.xpose.msra.mxu0 0.0
    %487 = vmatprep.subr.mxu0 0.0
    %488 = vmatpush1.xpose.msra.mxu0 0.0
    %489 = vmatprep.subr.mxu0 0.0
    %490 = vmatpush1.xpose.msra.mxu0 0.0
    %491 = vmatprep.mubr.f32.mxu0 0.0
    %492 = vmatmul.mubr.f32.gmra.mrb[0].mxu0 %v422
    %v493 = vpop.f32.mrb[0].mxu0
    %v494 = vadd.f32 0.0, %v493
    %v495 = vpop.f32.mrb[0].mxu0
    %496 = vdwg.mxu0
    %v498 = vsel %vm420, %v307, 0
    %v501 = vsel %vm420, %v398, 0
    %503 = vmatprep.subr.mxu0 0.0
    %504 = vmatpush1.xpose.msra.mxu0 %v501
    %505 = vmatprep.subr.mxu0 0.0
    %506 = vmatpush1.xpose.msra.mxu0 0.0
    %507 = vmatprep.subr.mxu0 0.0
    %508 = vmatpush1.xpose.msra.mxu0 0.0
    %509 = vmatprep.subr.mxu0 0.0
    %510 = vmatpush1.xpose.msra.mxu0 0.0
    %511 = vmatprep.subr.mxu0 0.0
    %512 = vmatpush1.xpose.msra.mxu0 0.0
    %513 = vmatprep.subr.mxu0 0.0
    %514 = vmatpush1.xpose.msra.mxu0 0.0
    %515 = vmatprep.subr.mxu0 0.0
    %516 = vmatpush1.xpose.msra.mxu0 0.0
    %517 = vmatprep.subr.mxu0 0.0
    %518 = vmatpush1.xpose.msra.mxu0 0.0
    %519 = vmatprep.subr.mxu0 0.0
    %520 = vmatpush1.xpose.msra.mxu0 0.0
    %521 = vmatprep.subr.mxu0 0.0
    %522 = vmatpush1.xpose.msra.mxu0 0.0
    %523 = vmatprep.subr.mxu0 0.0
    %524 = vmatpush1.xpose.msra.mxu0 0.0
    %525 = vmatprep.subr.mxu0 0.0
    %526 = vmatpush1.xpose.msra.mxu0 0.0
    %527 = vmatprep.subr.mxu0 0.0
    %528 = vmatpush1.xpose.msra.mxu0 0.0
    %529 = vmatprep.subr.mxu0 0.0
    %530 = vmatpush1.xpose.msra.mxu0 0.0
    %531 = vmatprep.subr.mxu0 0.0
    %532 = vmatpush1.xpose.msra.mxu0 0.0
    %533 = vmatprep.subr.mxu0 0.0
    %534 = vmatpush1.xpose.msra.mxu0 0.0
    %535 = vmatprep.subr.mxu0 0.0
    %536 = vmatpush1.xpose.msra.mxu0 0.0
    %537 = vmatprep.subr.mxu0 0.0
    %538 = vmatpush1.xpose.msra.mxu0 0.0
    %539 = vmatprep.subr.mxu0 0.0
    %540 = vmatpush1.xpose.msra.mxu0 0.0
    %541 = vmatprep.subr.mxu0 0.0
    %542 = vmatpush1.xpose.msra.mxu0 0.0
    %543 = vmatprep.subr.mxu0 0.0
    %544 = vmatpush1.xpose.msra.mxu0 0.0
    %545 = vmatprep.subr.mxu0 0.0
    %546 = vmatpush1.xpose.msra.mxu0 0.0
    %547 = vmatprep.subr.mxu0 0.0
    %548 = vmatpush1.xpose.msra.mxu0 0.0
    %549 = vmatprep.subr.mxu0 0.0
    %550 = vmatpush1.xpose.msra.mxu0 0.0
    %551 = vmatprep.subr.mxu0 0.0
    %552 = vmatpush1.xpose.msra.mxu0 0.0
    %553 = vmatprep.subr.mxu0 0.0
    %554 = vmatpush1.xpose.msra.mxu0 0.0
    %555 = vmatprep.subr.mxu0 0.0
    %556 = vmatpush1.xpose.msra.mxu0 0.0
    %557 = vmatprep.subr.mxu0 0.0
    %558 = vmatpush1.xpose.msra.mxu0 0.0
    %559 = vmatprep.subr.mxu0 0.0
    %560 = vmatpush1.xpose.msra.mxu0 0.0
    %561 = vmatprep.subr.mxu0 0.0
    %562 = vmatpush1.xpose.msra.mxu0 0.0
    %563 = vmatprep.subr.mxu0 0.0
    %564 = vmatpush1.xpose.msra.mxu0 0.0
    %565 = vmatprep.subr.mxu0 0.0
    %566 = vmatpush1.xpose.msra.mxu0 0.0
    %567 = vmatprep.mubr.f32.mxu0 0.0
    %568 = vmatmul.mubr.f32.gmra.mrb[0].mxu0 %v498
    %v569 = vpop.f32.mrb[0].mxu0
    %v570 = vadd.f32 0.0, %v569
    %v571 = vpop.f32.mrb[0].mxu0
    %572 = vdwg.mxu0
    %v573 = vsel %vm413, 1, 0
    %vm574 = vcmp.eq.s32.totalorder %v573, 1
    %v575 = vsel %vm574, %v494, -3.4028235e+38
    %v576 = vsel %vm574, %v570, -3.4028235e+38
    %v577 = vadd.f32 %v575, %v414
    %v578 = vadd.f32 %v576, %v415
    %v579 = vsel %vm420, %v577, -inf
    %580 = vmax.xlane.f32.xlu0 %v579
    %v581 = vpop.xlane.xlu0 %580
    %v582 = vsel %vm420, %v578, -inf
    %583 = vmax.xlane.f32.xlu0 %v582
    %v584 = vpop.xlane.xlu0 %583
    %v585 = vsub.f32 %v577, %v581
    %v586 = vsub.f32 %v578, %v584
    %v587 = vmul.f32 %v585, 1.442695
    %v588 = vpow.pop %v587
    %v589 = vmul.f32 %v586, 1.442695
    %v590 = vpow.pop %v589
    %v591 = vsel %vm420, %v588, 0.0
    %592 = vadd.xlane.f32.xlu0 %v591
    %v593 = vpop.xlane.xlu0 %592
    %v594 = vsel %vm420, %v590, 0.0
    %595 = vadd.xlane.f32.xlu0 %v594
    %v596 = vpop.xlane.xlu0 %595
    %v597 = vrcp.pop %v593
    %v598 = vmul.f32 %v588, %v597
    %v599 = vrcp.pop %v596
    %v600 = vmul.f32 %v590, %v599
    %v602 = vsel %vm420, %v598, 0
    %604 = vmatprep.subr.mxu0 0.0
    %605 = vmatpush1.msra.mxu0 %v402
    %606 = vmatprep.subr.mxu0 0.0
    %607 = vmatpush1.msra.mxu0 0.0
    %608 = vmatprep.subr.mxu0 0.0
    %609 = vmatpush1.msra.mxu0 0.0
    %610 = vmatprep.subr.mxu0 0.0
    %611 = vmatpush1.msra.mxu0 0.0
    %612 = vmatprep.subr.mxu0 0.0
    %613 = vmatpush1.msra.mxu0 0.0
    %614 = vmatprep.subr.mxu0 0.0
    %615 = vmatpush1.msra.mxu0 0.0
    %616 = vmatprep.subr.mxu0 0.0
    %617 = vmatpush1.msra.mxu0 0.0
    %618 = vmatprep.subr.mxu0 0.0
    %619 = vmatpush1.msra.mxu0 0.0
    %620 = vmatprep.subr.mxu0 0.0
    %621 = vmatpush1.msra.mxu0 0.0
    %622 = vmatprep.subr.mxu0 0.0
    %623 = vmatpush1.msra.mxu0 0.0
    %624 = vmatprep.subr.mxu0 0.0
    %625 = vmatpush1.msra.mxu0 0.0
    %626 = vmatprep.subr.mxu0 0.0
    %627 = vmatpush1.msra.mxu0 0.0
    %628 = vmatprep.subr.mxu0 0.0
    %629 = vmatpush1.msra.mxu0 0.0
    %630 = vmatprep.subr.mxu0 0.0
    %631 = vmatpush1.msra.mxu0 0.0
    %632 = vmatprep.subr.mxu0 0.0
    %633 = vmatpush1.msra.mxu0 0.0
    %634 = vmatprep.subr.mxu0 0.0
    %635 = vmatpush1.msra.mxu0 0.0
    %636 = vmatprep.subr.mxu0 0.0
    %637 = vmatpush1.msra.mxu0 0.0
    %638 = vmatprep.subr.mxu0 0.0
    %639 = vmatpush1.msra.mxu0 0.0
    %640 = vmatprep.subr.mxu0 0.0
    %641 = vmatpush1.msra.mxu0 0.0
    %642 = vmatprep.subr.mxu0 0.0
    %643 = vmatpush1.msra.mxu0 0.0
    %644 = vmatprep.subr.mxu0 0.0
    %645 = vmatpush1.msra.mxu0 0.0
    %646 = vmatprep.subr.mxu0 0.0
    %647 = vmatpush1.msra.mxu0 0.0
    %648 = vmatprep.subr.mxu0 0.0
    %649 = vmatpush1.msra.mxu0 0.0
    %650 = vmatprep.subr.mxu0 0.0
    %651 = vmatpush1.msra.mxu0 0.0
    %652 = vmatprep.subr.mxu0 0.0
    %653 = vmatpush1.msra.mxu0 0.0
    %654 = vmatprep.subr.mxu0 0.0
    %655 = vmatpush1.msra.mxu0 0.0
    %656 = vmatprep.subr.mxu0 0.0
    %657 = vmatpush1.msra.mxu0 0.0
    %658 = vmatprep.subr.mxu0 0.0
    %659 = vmatpush1.msra.mxu0 0.0
    %660 = vmatprep.subr.mxu0 0.0
    %661 = vmatpush1.msra.mxu0 0.0
    %662 = vmatprep.subr.mxu0 0.0
    %663 = vmatpush1.msra.mxu0 0.0
    %664 = vmatprep.subr.mxu0 0.0
    %665 = vmatpush1.msra.mxu0 0.0
    %666 = vmatprep.subr.mxu0 0.0
    %667 = vmatpush1.msra.mxu0 0.0
    %668 = vmatprep.mubr.f32.mxu0 0.0
    %669 = vmatmul.mubr.f32.gmra.mrb[0].mxu0 %v602
    %v670 = vpop.f32.mrb[0].mxu0
    %v671 = vadd.f32 0.0, %v670
    %v672 = vpop.f32.mrb[0].mxu0
    %673 = vdwg.mxu0
    %v675 = vsel %vm420, %v600, 0
    %677 = vmatprep.subr.mxu0 0.0
    %678 = vmatpush1.msra.mxu0 %v404
    %679 = vmatprep.subr.mxu0 0.0
    %680 = vmatpush1.msra.mxu0 0.0
    %681 = vmatprep.subr.mxu0 0.0
    %682 = vmatpush1.msra.mxu0 0.0
    %683 = vmatprep.subr.mxu0 0.0
    %684 = vmatpush1.msra.mxu0 0.0
    %685 = vmatprep.subr.mxu0 0.0
    %686 = vmatpush1.msra.mxu0 0.0
    %687 = vmatprep.subr.mxu0 0.0
    %688 = vmatpush1.msra.mxu0 0.0
    %689 = vmatprep.subr.mxu0 0.0
    %690 = vmatpush1.msra.mxu0 0.0
    %691 = vmatprep.subr.mxu0 0.0
    %692 = vmatpush1.msra.mxu0 0.0
    %693 = vmatprep.subr.mxu0 0.0
    %694 = vmatpush1.msra.mxu0 0.0
    %695 = vmatprep.subr.mxu0 0.0
    %696 = vmatpush1.msra.mxu0 0.0
    %697 = vmatprep.subr.mxu0 0.0
    %698 = vmatpush1.msra.mxu0 0.0
    %699 = vmatprep.subr.mxu0 0.0
    %700 = vmatpush1.msra.mxu0 0.0
    %701 = vmatprep.subr.mxu0 0.0
    %702 = vmatpush1.msra.mxu0 0.0
    %703 = vmatprep.subr.mxu0 0.0
    %704 = vmatpush1.msra.mxu0 0.0
    %705 = vmatprep.subr.mxu0 0.0
    %706 = vmatpush1.msra.mxu0 0.0
    %707 = vmatprep.subr.mxu0 0.0
    %708 = vmatpush1.msra.mxu0 0.0
    %709 = vmatprep.subr.mxu0 0.0
    %710 = vmatpush1.msra.mxu0 0.0
    %711 = vmatprep.subr.mxu0 0.0
    %712 = vmatpush1.msra.mxu0 0.0
    %713 = vmatprep.subr.mxu0 0.0
    %714 = vmatpush1.msra.mxu0 0.0
    %715 = vmatprep.subr.mxu0 0.0
    %716 = vmatpush1.msra.mxu0 0.0
    %717 = vmatprep.subr.mxu0 0.0
    %718 = vmatpush1.msra.mxu0 0.0
    %719 = vmatprep.subr.mxu0 0.0
    %720 = vmatpush1.msra.mxu0 0.0
    %721 = vmatprep.subr.mxu0 0.0
    %722 = vmatpush1.msra.mxu0 0.0
    %723 = vmatprep.subr.mxu0 0.0
    %724 = vmatpush1.msra.mxu0 0.0
    %725 = vmatprep.subr.mxu0 0.0
    %726 = vmatpush1.msra.mxu0 0.0
    %727 = vmatprep.subr.mxu0 0.0
    %728 = vmatpush1.msra.mxu0 0.0
    %729 = vmatprep.subr.mxu0 0.0
    %730 = vmatpush1.msra.mxu0 0.0
    %731 = vmatprep.subr.mxu0 0.0
    %732 = vmatpush1.msra.mxu0 0.0
    %733 = vmatprep.subr.mxu0 0.0
    %734 = vmatpush1.msra.mxu0 0.0
    %735 = vmatprep.subr.mxu0 0.0
    %736 = vmatpush1.msra.mxu0 0.0
    %737 = vmatprep.subr.mxu0 0.0
    %738 = vmatpush1.msra.mxu0 0.0
    %739 = vmatprep.subr.mxu0 0.0
    %740 = vmatpush1.msra.mxu0 0.0
    %741 = vmatprep.mubr.f32.mxu0 0.0
    %742 = vmatmul.mubr.f32.gmra.mrb[0].mxu0 %v675
    %v743 = vpop.f32.mrb[0].mxu0
    %v744 = vadd.f32 0.0, %v743
    %v745 = vpop.f32.mrb[0].mxu0
    %746 = vdwg.mxu0
    %747 = vrot.lane.b32.xlu0 %v306, 120
    %v748 = vpop.permute.xlu0 %747
    %749 = vrot.lane.b32.xlu0 %v397, 120
    %v750 = vpop.permute.xlu0 %749
    %v751 = vsel %vm420, %v748, 0
    %v753 = vsel %vm420, %v750, 0
    %755 = vmatprep.subr.mxu0 0.0
    %756 = vmatpush1.xpose.msra.mxu0 %v753
    %757 = vmatprep.subr.mxu0 0.0
    %758 = vmatpush1.xpose.msra.mxu0 0.0
    %759 = vmatprep.subr.mxu0 0.0
    %760 = vmatpush1.xpose.msra.mxu0 0.0
    %761 = vmatprep.subr.mxu0 0.0
    %762 = vmatpush1.xpose.msra.mxu0 0.0
    %763 = vmatprep.subr.mxu0 0.0
    %764 = vmatpush1.xpose.msra.mxu0 0.0
    %765 = vmatprep.subr.mxu0 0.0
    %766 = vmatpush1.xpose.msra.mxu0 0.0
    %767 = vmatprep.subr.mxu0 0.0
    %768 = vmatpush1.xpose.msra.mxu0 0.0
    %769 = vmatprep.subr.mxu0 0.0
    %770 = vmatpush1.xpose.msra.mxu0 0.0
    %771 = vmatprep.subr.mxu0 0.0
    %772 = vmatpush1.xpose.msra.mxu0 0.0
    %773 = vmatprep.subr.mxu0 0.0
    %774 = vmatpush1.xpose.msra.mxu0 0.0
    %775 = vmatprep.subr.mxu0 0.0
    %776 = vmatpush1.xpose.msra.mxu0 0.0
    %777 = vmatprep.subr.mxu0 0.0
    %778 = vmatpush1.xpose.msra.mxu0 0.0
    %779 = vmatprep.subr.mxu0 0.0
    %780 = vmatpush1.xpose.msra.mxu0 0.0
    %781 = vmatprep.subr.mxu0 0.0
    %782 = vmatpush1.xpose.msra.mxu0 0.0
    %783 = vmatprep.subr.mxu0 0.0
    %784 = vmatpush1.xpose.msra.mxu0 0.0
    %785 = vmatprep.subr.mxu0 0.0
    %786 = vmatpush1.xpose.msra.mxu0 0.0
    %787 = vmatprep.subr.mxu0 0.0
    %788 = vmatpush1.xpose.msra.mxu0 0.0
    %789 = vmatprep.subr.mxu0 0.0
    %790 = vmatpush1.xpose.msra.mxu0 0.0
    %791 = vmatprep.subr.mxu0 0.0
    %792 = vmatpush1.xpose.msra.mxu0 0.0
    %793 = vmatprep.subr.mxu0 0.0
    %794 = vmatpush1.xpose.msra.mxu0 0.0
    %795 = vmatprep.subr.mxu0 0.0
    %796 = vmatpush1.xpose.msra.mxu0 0.0
    %797 = vmatprep.subr.mxu0 0.0
    %798 = vmatpush1.xpose.msra.mxu0 0.0
    %799 = vmatprep.subr.mxu0 0.0
    %800 = vmatpush1.xpose.msra.mxu0 0.0
    %801 = vmatprep.subr.mxu0 0.0
    %802 = vmatpush1.xpose.msra.mxu0 0.0
    %803 = vmatprep.subr.mxu0 0.0
    %804 = vmatpush1.xpose.msra.mxu0 0.0
    %805 = vmatprep.subr.mxu0 0.0
    %806 = vmatpush1.xpose.msra.mxu0 0.0
    %807 = vmatprep.subr.mxu0 0.0
    %808 = vmatpush1.xpose.msra.mxu0 0.0
    %809 = vmatprep.subr.mxu0 0.0
    %810 = vmatpush1.xpose.msra.mxu0 0.0
    %811 = vmatprep.subr.mxu0 0.0
    %812 = vmatpush1.xpose.msra.mxu0 0.0
    %813 = vmatprep.subr.mxu0 0.0
    %814 = vmatpush1.xpose.msra.mxu0 0.0
    %815 = vmatprep.subr.mxu0 0.0
    %816 = vmatpush1.xpose.msra.mxu0 0.0
    %817 = vmatprep.subr.mxu0 0.0
    %818 = vmatpush1.xpose.msra.mxu0 0.0
    %819 = vmatprep.mubr.f32.mxu0 0.0
    %820 = vmatmul.mubr.f32.gmra.mrb[0].mxu0 %v751
    %v821 = vpop.f32.mrb[0].mxu0
    %v822 = vadd.f32 0.0, %v821
    %v823 = vpop.f32.mrb[0].mxu0
    %824 = vdwg.mxu0
    %825 = vrot.lane.b32.xlu0 %v307, 120
    %v826 = vpop.permute.xlu0 %825
    %827 = vrot.lane.b32.xlu0 %v398, 120
    %v828 = vpop.permute.xlu0 %827
    %v829 = vsel %vm420, %v826, 0
    %v831 = vsel %vm420, %v828, 0
    %833 = vmatprep.subr.mxu0 0.0
    %834 = vmatpush1.xpose.msra.mxu0 %v831
    %835 = vmatprep.subr.mxu0 0.0
    %836 = vmatpush1.xpose.msra.mxu0 0.0
    %837 = vmatprep.subr.mxu0 0.0
    %838 = vmatpush1.xpose.msra.mxu0 0.0
    %839 = vmatprep.subr.mxu0 0.0
    %840 = vmatpush1.xpose.msra.mxu0 0.0
    %841 = vmatprep.subr.mxu0 0.0
    %842 = vmatpush1.xpose.msra.mxu0 0.0
    %843 = vmatprep.subr.mxu0 0.0
    %844 = vmatpush1.xpose.msra.mxu0 0.0
    %845 = vmatprep.subr.mxu0 0.0
    %846 = vmatpush1.xpose.msra.mxu0 0.0
    %847 = vmatprep.subr.mxu0 0.0
    %848 = vmatpush1.xpose.msra.mxu0 0.0
    %849 = vmatprep.subr.mxu0 0.0
    %850 = vmatpush1.xpose.msra.mxu0 0.0
    %851 = vmatprep.subr.mxu0 0.0
    %852 = vmatpush1.xpose.msra.mxu0 0.0
    %853 = vmatprep.subr.mxu0 0.0
    %854 = vmatpush1.xpose.msra.mxu0 0.0
    %855 = vmatprep.subr.mxu0 0.0
    %856 = vmatpush1.xpose.msra.mxu0 0.0
    %857 = vmatprep.subr.mxu0 0.0
    %858 = vmatpush1.xpose.msra.mxu0 0.0
    %859 = vmatprep.subr.mxu0 0.0
    %860 = vmatpush1.xpose.msra.mxu0 0.0
    %861 = vmatprep.subr.mxu0 0.0
    %862 = vmatpush1.xpose.msra.mxu0 0.0
    %863 = vmatprep.subr.mxu0 0.0
    %864 = vmatpush1.xpose.msra.mxu0 0.0
    %865 = vmatprep.subr.mxu0 0.0
    %866 = vmatpush1.xpose.msra.mxu0 0.0
    %867 = vmatprep.subr.mxu0 0.0
    %868 = vmatpush1.xpose.msra.mxu0 0.0
    %869 = vmatprep.subr.mxu0 0.0
    %870 = vmatpush1.xpose.msra.mxu0 0.0
    %871 = vmatprep.subr.mxu0 0.0
    %872 = vmatpush1.xpose.msra.mxu0 0.0
    %873 = vmatprep.subr.mxu0 0.0
    %874 = vmatpush1.xpose.msra.mxu0 0.0
    %875 = vmatprep.subr.mxu0 0.0
    %876 = vmatpush1.xpose.msra.mxu0 0.0
    %877 = vmatprep.subr.mxu0 0.0
    %878 = vmatpush1.xpose.msra.mxu0 0.0
    %879 = vmatprep.subr.mxu0 0.0
    %880 = vmatpush1.xpose.msra.mxu0 0.0
    %881 = vmatprep.subr.mxu0 0.0
    %882 = vmatpush1.xpose.msra.mxu0 0.0
    %883 = vmatprep.subr.mxu0 0.0
    %884 = vmatpush1.xpose.msra.mxu0 0.0
    %885 = vmatprep.subr.mxu0 0.0
    %886 = vmatpush1.xpose.msra.mxu0 0.0
    %887 = vmatprep.subr.mxu0 0.0
    %888 = vmatpush1.xpose.msra.mxu0 0.0
    %889 = vmatprep.subr.mxu0 0.0
    %890 = vmatpush1.xpose.msra.mxu0 0.0
    %891 = vmatprep.subr.mxu0 0.0
    %892 = vmatpush1.xpose.msra.mxu0 0.0
    %893 = vmatprep.subr.mxu0 0.0
    %894 = vmatpush1.xpose.msra.mxu0 0.0
    %895 = vmatprep.subr.mxu0 0.0
    %896 = vmatpush1.xpose.msra.mxu0 0.0
    %897 = vmatprep.mubr.f32.mxu0 0.0
    %898 = vmatmul.mubr.f32.gmra.mrb[0].mxu0 %v829
    %v899 = vpop.f32.mrb[0].mxu0
    %v900 = vadd.f32 0.0, %v899
    %v901 = vpop.f32.mrb[0].mxu0
    %902 = vdwg.mxu0
    %v903 = vsel %vm574, %v822, -3.4028235e+38
    %v904 = vsel %vm574, %v900, -3.4028235e+38
    %v905 = vadd.f32 %v903, %v414
    %v906 = vadd.f32 %v904, %v415
    %v907 = vsel %vm420, %v905, -inf
    %908 = vmax.xlane.f32.xlu0 %v907
    %v909 = vpop.xlane.xlu0 %908
    %v910 = vsel %vm420, %v906, -inf
    %911 = vmax.xlane.f32.xlu0 %v910
    %v912 = vpop.xlane.xlu0 %911
    %v913 = vsub.f32 %v905, %v909
    %v914 = vsub.f32 %v906, %v912
    %v915 = vmul.f32 %v913, 1.442695
    %v916 = vpow.pop %v915
    %v917 = vmul.f32 %v914, 1.442695
    %v918 = vpow.pop %v917
    %v919 = vsel %vm420, %v916, 0.0
    %920 = vadd.xlane.f32.xlu0 %v919
    %v921 = vpop.xlane.xlu0 %920
    %v922 = vsel %vm420, %v918, 0.0
    %923 = vadd.xlane.f32.xlu0 %v922
    %v924 = vpop.xlane.xlu0 %923
    %v925 = vrcp.pop %v921
    %v926 = vmul.f32 %v916, %v925
    %v927 = vrcp.pop %v924
    %v928 = vmul.f32 %v918, %v927
    %929 = vrot.lane.b32.xlu0 %v205, 56
    %v930 = vpop.permute.xlu0 %929
    %v933 = vsel %vm420, %v926, 0
    %935 = vmatprep.subr.mxu0 0.0
    %936 = vmatpush1.msra.mxu0 %v930
    %937 = vmatprep.subr.mxu0 0.0
    %938 = vmatpush1.msra.mxu0 0.0
    %939 = vmatprep.subr.mxu0 0.0
    %940 = vmatpush1.msra.mxu0 0.0
    %941 = vmatprep.subr.mxu0 0.0
    %942 = vmatpush1.msra.mxu0 0.0
    %943 = vmatprep.subr.mxu0 0.0
    %944 = vmatpush1.msra.mxu0 0.0
    %945 = vmatprep.subr.mxu0 0.0
    %946 = vmatpush1.msra.mxu0 0.0
    %947 = vmatprep.subr.mxu0 0.0
    %948 = vmatpush1.msra.mxu0 0.0
    %949 = vmatprep.subr.mxu0 0.0
    %950 = vmatpush1.msra.mxu0 0.0
    %951 = vmatprep.subr.mxu0 0.0
    %952 = vmatpush1.msra.mxu0 0.0
    %953 = vmatprep.subr.mxu0 0.0
    %954 = vmatpush1.msra.mxu0 0.0
    %955 = vmatprep.subr.mxu0 0.0
    %956 = vmatpush1.msra.mxu0 0.0
    %957 = vmatprep.subr.mxu0 0.0
    %958 = vmatpush1.msra.mxu0 0.0
    %959 = vmatprep.subr.mxu0 0.0
    %960 = vmatpush1.msra.mxu0 0.0
    %961 = vmatprep.subr.mxu0 0.0
    %962 = vmatpush1.msra.mxu0 0.0
    %963 = vmatprep.subr.mxu0 0.0
    %964 = vmatpush1.msra.mxu0 0.0
    %965 = vmatprep.subr.mxu0 0.0
    %966 = vmatpush1.msra.mxu0 0.0
    %967 = vmatprep.subr.mxu0 0.0
    %968 = vmatpush1.msra.mxu0 0.0
    %969 = vmatprep.subr.mxu0 0.0
    %970 = vmatpush1.msra.mxu0 0.0
    %971 = vmatprep.subr.mxu0 0.0
    %972 = vmatpush1.msra.mxu0 0.0
    %973 = vmatprep.subr.mxu0 0.0
    %974 = vmatpush1.msra.mxu0 0.0
    %975 = vmatprep.subr.mxu0 0.0
    %976 = vmatpush1.msra.mxu0 0.0
    %977 = vmatprep.subr.mxu0 0.0
    %978 = vmatpush1.msra.mxu0 0.0
    %979 = vmatprep.subr.mxu0 0.0
    %980 = vmatpush1.msra.mxu0 0.0
    %981 = vmatprep.subr.mxu0 0.0
    %982 = vmatpush1.msra.mxu0 0.0
    %983 = vmatprep.subr.mxu0 0.0
    %984 = vmatpush1.msra.mxu0 0.0
    %985 = vmatprep.subr.mxu0 0.0
    %986 = vmatpush1.msra.mxu0 0.0
    %987 = vmatprep.subr.mxu0 0.0
    %988 = vmatpush1.msra.mxu0 0.0
    %989 = vmatprep.subr.mxu0 0.0
    %990 = vmatpush1.msra.mxu0 0.0
    %991 = vmatprep.subr.mxu0 0.0
    %992 = vmatpush1.msra.mxu0 0.0
    %993 = vmatprep.subr.mxu0 0.0
    %994 = vmatpush1.msra.mxu0 0.0
    %995 = vmatprep.subr.mxu0 0.0
    %996 = vmatpush1.msra.mxu0 0.0
    %997 = vmatprep.subr.mxu0 0.0
    %998 = vmatpush1.msra.mxu0 0.0
    %999 = vmatprep.mubr.f32.mxu0 0.0
    %1000 = vmatmul.mubr.f32.gmra.mrb[0].mxu0 %v933
    %v1001 = vpop.f32.mrb[0].mxu0
    %v1002 = vadd.f32 0.0, %v1001
    %v1003 = vpop.f32.mrb[0].mxu0
    %1004 = vdwg.mxu0
    %1005 = vrot.lane.b32.xlu0 %v210, 56
    %v1006 = vpop.permute.xlu0 %1005
    %v1009 = vsel %vm420, %v928, 0
    %1011 = vmatprep.subr.mxu0 0.0
    %1012 = vmatpush1.msra.mxu0 %v1006
    %1013 = vmatprep.subr.mxu0 0.0
    %1014 = vmatpush1.msra.mxu0 0.0
    %1015 = vmatprep.subr.mxu0 0.0
    %1016 = vmatpush1.msra.mxu0 0.0
    %1017 = vmatprep.subr.mxu0 0.0
    %1018 = vmatpush1.msra.mxu0 0.0
    %1019 = vmatprep.subr.mxu0 0.0
    %1020 = vmatpush1.msra.mxu0 0.0
    %1021 = vmatprep.subr.mxu0 0.0
    %1022 = vmatpush1.msra.mxu0 0.0
    %1023 = vmatprep.subr.mxu0 0.0
    %1024 = vmatpush1.msra.mxu0 0.0
    %1025 = vmatprep.subr.mxu0 0.0
    %1026 = vmatpush1.msra.mxu0 0.0
    %1027 = vmatprep.subr.mxu0 0.0
    %1028 = vmatpush1.msra.mxu0 0.0
    %1029 = vmatprep.subr.mxu0 0.0
    %1030 = vmatpush1.msra.mxu0 0.0
    %1031 = vmatprep.subr.mxu0 0.0
    %1032 = vmatpush1.msra.mxu0 0.0
    %1033 = vmatprep.subr.mxu0 0.0
    %1034 = vmatpush1.msra.mxu0 0.0
    %1035 = vmatprep.subr.mxu0 0.0
    %1036 = vmatpush1.msra.mxu0 0.0
    %1037 = vmatprep.subr.mxu0 0.0
    %1038 = vmatpush1.msra.mxu0 0.0
    %1039 = vmatprep.subr.mxu0 0.0
    %1040 = vmatpush1.msra.mxu0 0.0
    %1041 = vmatprep.subr.mxu0 0.0
    %1042 = vmatpush1.msra.mxu0 0.0
    %1043 = vmatprep.subr.mxu0 0.0
    %1044 = vmatpush1.msra.mxu0 0.0
    %1045 = vmatprep.subr.mxu0 0.0
    %1046 = vmatpush1.msra.mxu0 0.0
    %1047 = vmatprep.subr.mxu0 0.0
    %1048 = vmatpush1.msra.mxu0 0.0
    %1049 = vmatprep.subr.mxu0 0.0
    %1050 = vmatpush1.msra.mxu0 0.0
    %1051 = vmatprep.subr.mxu0 0.0
    %1052 = vmatpush1.msra.mxu0 0.0
    %1053 = vmatprep.subr.mxu0 0.0
    %1054 = vmatpush1.msra.mxu0 0.0
    %1055 = vmatprep.subr.mxu0 0.0
    %1056 = vmatpush1.msra.mxu0 0.0
    %1057 = vmatprep.subr.mxu0 0.0
    %1058 = vmatpush1.msra.mxu0 0.0
    %1059 = vmatprep.subr.mxu0 0.0
    %1060 = vmatpush1.msra.mxu0 0.0
    %1061 = vmatprep.subr.mxu0 0.0
    %1062 = vmatpush1.msra.mxu0 0.0
    %1063 = vmatprep.subr.mxu0 0.0
    %1064 = vmatpush1.msra.mxu0 0.0
    %1065 = vmatprep.subr.mxu0 0.0
    %1066 = vmatpush1.msra.mxu0 0.0
    %1067 = vmatprep.subr.mxu0 0.0
    %1068 = vmatpush1.msra.mxu0 0.0
    %1069 = vmatprep.subr.mxu0 0.0
    %1070 = vmatpush1.msra.mxu0 0.0
    %1071 = vmatprep.subr.mxu0 0.0
    %1072 = vmatpush1.msra.mxu0 0.0
    %1073 = vmatprep.subr.mxu0 0.0
    %1074 = vmatpush1.msra.mxu0 0.0
    %1075 = vmatprep.mubr.f32.mxu0 0.0
    %1076 = vmatmul.mubr.f32.gmra.mrb[0].mxu0 %v1009
    %v1077 = vpop.f32.mrb[0].mxu0
    %v1078 = vadd.f32 0.0, %v1077
    %v1079 = vpop.f32.mrb[0].mxu0
    %1080 = vdwg.mxu0
    %v1082 = vsel %vm420, %v1002, 0
    %v1085 = vsel %vm420, %v1078, 0
    %1087 = vmatprep.subr.mxu0 0.0
    %1088 = vmatpush1.msra.mxu0 %v417
    %1089 = vmatprep.subr.mxu0 0.0
    %1090 = vmatpush1.msra.mxu0 0.0
    %1091 = vmatprep.subr.mxu0 0.0
    %1092 = vmatpush1.msra.mxu0 0.0
    %1093 = vmatprep.subr.mxu0 0.0
    %1094 = vmatpush1.msra.mxu0 0.0
    %1095 = vmatprep.subr.mxu0 0.0
    %1096 = vmatpush1.msra.mxu0 0.0
    %1097 = vmatprep.subr.mxu0 0.0
    %1098 = vmatpush1.msra.mxu0 0.0
    %1099 = vmatprep.subr.mxu0 0.0
    %1100 = vmatpush1.msra.mxu0 0.0
    %1101 = vmatprep.subr.mxu0 0.0
    %1102 = vmatpush1.msra.mxu0 0.0
    %1103 = vmatprep.subr.mxu0 0.0
    %1104 = vmatpush1.msra.mxu0 0.0
    %1105 = vmatprep.subr.mxu0 0.0
    %1106 = vmatpush1.msra.mxu0 0.0
    %1107 = vmatprep.subr.mxu0 0.0
    %1108 = vmatpush1.msra.mxu0 0.0
    %1109 = vmatprep.subr.mxu0 0.0
    %1110 = vmatpush1.msra.mxu0 0.0
    %1111 = vmatprep.subr.mxu0 0.0
    %1112 = vmatpush1.msra.mxu0 0.0
    %1113 = vmatprep.subr.mxu0 0.0
    %1114 = vmatpush1.msra.mxu0 0.0
    %1115 = vmatprep.subr.mxu0 0.0
    %1116 = vmatpush1.msra.mxu0 0.0
    %1117 = vmatprep.subr.mxu0 0.0
    %1118 = vmatpush1.msra.mxu0 0.0
    %1119 = vmatprep.subr.mxu0 0.0
    %1120 = vmatpush1.msra.mxu0 0.0
    %1121 = vmatprep.subr.mxu0 0.0
    %1122 = vmatpush1.msra.mxu0 0.0
    %1123 = vmatprep.subr.mxu0 0.0
    %1124 = vmatpush1.msra.mxu0 0.0
    %1125 = vmatprep.subr.mxu0 0.0
    %1126 = vmatpush1.msra.mxu0 0.0
    %1127 = vmatprep.subr.mxu0 0.0
    %1128 = vmatpush1.msra.mxu0 0.0
    %1129 = vmatprep.subr.mxu0 0.0
    %1130 = vmatpush1.msra.mxu0 0.0
    %1131 = vmatprep.subr.mxu0 0.0
    %1132 = vmatpush1.msra.mxu0 0.0
    %1133 = vmatprep.subr.mxu0 0.0
    %1134 = vmatpush1.msra.mxu0 0.0
    %1135 = vmatprep.subr.mxu0 0.0
    %1136 = vmatpush1.msra.mxu0 0.0
    %1137 = vmatprep.subr.mxu0 0.0
    %1138 = vmatpush1.msra.mxu0 0.0
    %1139 = vmatprep.subr.mxu0 0.0
    %1140 = vmatpush1.msra.mxu0 0.0
    %1141 = vmatprep.subr.mxu0 0.0
    %1142 = vmatpush1.msra.mxu0 0.0
    %1143 = vmatprep.subr.mxu0 0.0
    %1144 = vmatpush1.msra.mxu0 0.0
    %1145 = vmatprep.subr.mxu0 0.0
    %1146 = vmatpush1.msra.mxu0 0.0
    %1147 = vmatprep.subr.mxu0 0.0
    %1148 = vmatpush1.msra.mxu0 0.0
    %1149 = vmatprep.subr.mxu0 0.0
    %1150 = vmatpush1.msra.mxu0 0.0
    %1151 = vmatprep.mubr.f32.mxu0 0.0
    %1152 = vmatmul.mubr.f32.gmra.mrb[0].mxu0 %v1082
    %v1153 = vpop.f32.mrb[0].mxu0
    %v1154 = vadd.f32 0.0, %v1153
    %v1155 = vpop.f32.mrb[0].mxu0
    %1156 = vmatprep.mubr.f32.mxu0 0.0
    %1157 = vmatmul.mubr.f32.gmra.mrb[0].mxu0 %v1085
    %v1158 = vpop.f32.mrb[0].mxu0
    %v1159 = vadd.f32 0.0, %v1158
    %v1160 = vpop.f32.mrb[0].mxu0
    %1161 = vdwg.mxu0
    %v1163 = vsel %vm420, %v671, 0
    %v1166 = vsel %vm420, %v744, 0
    %1168 = vmatprep.subr.mxu0 0.0
    %1169 = vmatpush1.msra.mxu0 %v416
    %1170 = vmatprep.subr.mxu0 0.0
    %1171 = vmatpush1.msra.mxu0 0.0
    %1172 = vmatprep.subr.mxu0 0.0
    %1173 = vmatpush1.msra.mxu0 0.0
    %1174 = vmatprep.subr.mxu0 0.0
    %1175 = vmatpush1.msra.mxu0 0.0
    %1176 = vmatprep.subr.mxu0 0.0
    %1177 = vmatpush1.msra.mxu0 0.0
    %1178 = vmatprep.subr.mxu0 0.0
    %1179 = vmatpush1.msra.mxu0 0.0
    %1180 = vmatprep.subr.mxu0 0.0
    %1181 = vmatpush1.msra.mxu0 0.0
    %1182 = vmatprep.subr.mxu0 0.0
    %1183 = vmatpush1.msra.mxu0 0.0
    %1184 = vmatprep.subr.mxu0 0.0
    %1185 = vmatpush1.msra.mxu0 0.0
    %1186 = vmatprep.subr.mxu0 0.0
    %1187 = vmatpush1.msra.mxu0 0.0
    %1188 = vmatprep.subr.mxu0 0.0
    %1189 = vmatpush1.msra.mxu0 0.0
    %1190 = vmatprep.subr.mxu0 0.0
    %1191 = vmatpush1.msra.mxu0 0.0
    %1192 = vmatprep.subr.mxu0 0.0
    %1193 = vmatpush1.msra.mxu0 0.0
    %1194 = vmatprep.subr.mxu0 0.0
    %1195 = vmatpush1.msra.mxu0 0.0
    %1196 = vmatprep.subr.mxu0 0.0
    %1197 = vmatpush1.msra.mxu0 0.0
    %1198 = vmatprep.subr.mxu0 0.0
    %1199 = vmatpush1.msra.mxu0 0.0
    %1200 = vmatprep.subr.mxu0 0.0
    %1201 = vmatpush1.msra.mxu0 0.0
    %1202 = vmatprep.subr.mxu0 0.0
    %1203 = vmatpush1.msra.mxu0 0.0
    %1204 = vmatprep.subr.mxu0 0.0
    %1205 = vmatpush1.msra.mxu0 0.0
    %1206 = vmatprep.subr.mxu0 0.0
    %1207 = vmatpush1.msra.mxu0 0.0
    %1208 = vmatprep.subr.mxu0 0.0
    %1209 = vmatpush1.msra.mxu0 0.0
    %1210 = vmatprep.subr.mxu0 0.0
    %1211 = vmatpush1.msra.mxu0 0.0
    %1212 = vmatprep.subr.mxu0 0.0
    %1213 = vmatpush1.msra.mxu0 0.0
    %1214 = vmatprep.subr.mxu0 0.0
    %1215 = vmatpush1.msra.mxu0 0.0
    %1216 = vmatprep.subr.mxu0 0.0
    %1217 = vmatpush1.msra.mxu0 0.0
    %1218 = vmatprep.subr.mxu0 0.0
    %1219 = vmatpush1.msra.mxu0 0.0
    %1220 = vmatprep.subr.mxu0 0.0
    %1221 = vmatpush1.msra.mxu0 0.0
    %1222 = vmatprep.subr.mxu0 0.0
    %1223 = vmatpush1.msra.mxu0 0.0
    %1224 = vmatprep.subr.mxu0 0.0
    %1225 = vmatpush1.msra.mxu0 0.0
    %1226 = vmatprep.subr.mxu0 0.0
    %1227 = vmatpush1.msra.mxu0 0.0
    %1228 = vmatprep.subr.mxu0 0.0
    %1229 = vmatpush1.msra.mxu0 0.0
    %1230 = vmatprep.subr.mxu0 0.0
    %1231 = vmatpush1.msra.mxu0 0.0
    %1232 = vmatprep.mubr.f32.mxu0 0.0
    %1233 = vmatmul.mubr.f32.gmra.mrb[0].mxu0 %v1163
    %v1234 = vpop.f32.mrb[0].mxu0
    %v1235 = vadd.f32 %v1154, %v1234
    %v1236 = vpop.f32.mrb[0].mxu0
    %1237 = vmatprep.mubr.f32.mxu0 0.0
    %1238 = vmatmul.mubr.f32.gmra.mrb[0].mxu0 %v1166
    %v1239 = vpop.f32.mrb[0].mxu0
    %v1240 = vadd.f32 %v1159, %v1239
    %v1241 = vpop.f32.mrb[0].mxu0
    %1242 = vdwg.mxu0
    %1243 = vrot.lane.b32.xlu0 %v306, 112
    %v1244 = vpop.permute.xlu0 %1243
    %1245 = vrot.lane.b32.xlu0 %v397, 112
    %v1246 = vpop.permute.xlu0 %1245
    %v1247 = vsel %vm420, %v1244, 0
    %v1249 = vsel %vm420, %v1246, 0
    %1251 = vmatprep.subr.mxu0 0.0
    %1252 = vmatpush1.xpose.msra.mxu0 %v1249
    %1253 = vmatprep.subr.mxu0 0.0
    %1254 = vmatpush1.xpose.msra.mxu0 0.0
    %1255 = vmatprep.subr.mxu0 0.0
    %1256 = vmatpush1.xpose.msra.mxu0 0.0
    %1257 = vmatprep.subr.mxu0 0.0
    %1258 = vmatpush1.xpose.msra.mxu0 0.0
    %1259 = vmatprep.subr.mxu0 0.0
    %1260 = vmatpush1.xpose.msra.mxu0 0.0
    %1261 = vmatprep.subr.mxu0 0.0
    %1262 = vmatpush1.xpose.msra.mxu0 0.0
    %1263 = vmatprep.subr.mxu0 0.0
    %1264 = vmatpush1.xpose.msra.mxu0 0.0
    %1265 = vmatprep.subr.mxu0 0.0
    %1266 = vmatpush1.xpose.msra.mxu0 0.0
    %1267 = vmatprep.subr.mxu0 0.0
    %1268 = vmatpush1.xpose.msra.mxu0 0.0
    %1269 = vmatprep.subr.mxu0 0.0
    %1270 = vmatpush1.xpose.msra.mxu0 0.0
    %1271 = vmatprep.subr.mxu0 0.0
    %1272 = vmatpush1.xpose.msra.mxu0 0.0
    %1273 = vmatprep.subr.mxu0 0.0
    %1274 = vmatpush1.xpose.msra.mxu0 0.0
    %1275 = vmatprep.subr.mxu0 0.0
    %1276 = vmatpush1.xpose.msra.mxu0 0.0
    %1277 = vmatprep.subr.mxu0 0.0
    %1278 = vmatpush1.xpose.msra.mxu0 0.0
    %1279 = vmatprep.subr.mxu0 0.0
    %1280 = vmatpush1.xpose.msra.mxu0 0.0
    %1281 = vmatprep.subr.mxu0 0.0
    %1282 = vmatpush1.xpose.msra.mxu0 0.0
    %1283 = vmatprep.subr.mxu0 0.0
    %1284 = vmatpush1.xpose.msra.mxu0 0.0
    %1285 = vmatprep.subr.mxu0 0.0
    %1286 = vmatpush1.xpose.msra.mxu0 0.0
    %1287 = vmatprep.subr.mxu0 0.0
    %1288 = vmatpush1.xpose.msra.mxu0 0.0
    %1289 = vmatprep.subr.mxu0 0.0
    %1290 = vmatpush1.xpose.msra.mxu0 0.0
    %1291 = vmatprep.subr.mxu0 0.0
    %1292 = vmatpush1.xpose.msra.mxu0 0.0
    %1293 = vmatprep.subr.mxu0 0.0
    %1294 = vmatpush1.xpose.msra.mxu0 0.0
    %1295 = vmatprep.subr.mxu0 0.0
    %1296 = vmatpush1.xpose.msra.mxu0 0.0
    %1297 = vmatprep.subr.mxu0 0.0
    %1298 = vmatpush1.xpose.msra.mxu0 0.0
    %1299 = vmatprep.subr.mxu0 0.0
    %1300 = vmatpush1.xpose.msra.mxu0 0.0
    %1301 = vmatprep.subr.mxu0 0.0
    %1302 = vmatpush1.xpose.msra.mxu0 0.0
    %1303 = vmatprep.subr.mxu0 0.0
    %1304 = vmatpush1.xpose.msra.mxu0 0.0
    %1305 = vmatprep.subr.mxu0 0.0
    %1306 = vmatpush1.xpose.msra.mxu0 0.0
    %1307 = vmatprep.subr.mxu0 0.0
    %1308 = vmatpush1.xpose.msra.mxu0 0.0
    %1309 = vmatprep.subr.mxu0 0.0
    %1310 = vmatpush1.xpose.msra.mxu0 0.0
    %1311 = vmatprep.subr.mxu0 0.0
    %1312 = vmatpush1.xpose.msra.mxu0 0.0
    %1313 = vmatprep.subr.mxu0 0.0
    %1314 = vmatpush1.xpose.msra.mxu0 0.0
    %1315 = vmatprep.mubr.f32.mxu0 0.0
    %1316 = vmatmul.mubr.f32.gmra.mrb[0].mxu0 %v1247
    %v1317 = vpop.f32.mrb[0].mxu0
    %v1318 = vadd.f32 0.0, %v1317
    %v1319 = vpop.f32.mrb[0].mxu0
    %1320 = vdwg.mxu0
    %1321 = vrot.lane.b32.xlu0 %v307, 112
    %v1322 = vpop.permute.xlu0 %1321
    %1323 = vrot.lane.b32.xlu0 %v398, 112
    %v1324 = vpop.permute.xlu0 %1323
    %v1325 = vsel %vm420, %v1322, 0
    %v1327 = vsel %vm420, %v1324, 0
    %1329 = vmatprep.subr.mxu0 0.0
    %1330 = vmatpush1.xpose.msra.mxu0 %v1327
    %1331 = vmatprep.subr.mxu0 0.0
    %1332 = vmatpush1.xpose.msra.mxu0 0.0
    %1333 = vmatprep.subr.mxu0 0.0
    %1334 = vmatpush1.xpose.msra.mxu0 0.0
    %1335 = vmatprep.subr.mxu0 0.0
    %1336 = vmatpush1.xpose.msra.mxu0 0.0
    %1337 = vmatprep.subr.mxu0 0.0
    %1338 = vmatpush1.xpose.msra.mxu0 0.0
    %1339 = vmatprep.subr.mxu0 0.0
    %1340 = vmatpush1.xpose.msra.mxu0 0.0
    %1341 = vmatprep.subr.mxu0 0.0
    %1342 = vmatpush1.xpose.msra.mxu0 0.0
    %1343 = vmatprep.subr.mxu0 0.0
    %1344 = vmatpush1.xpose.msra.mxu0 0.0
    %1345 = vmatprep.subr.mxu0 0.0
    %1346 = vmatpush1.xpose.msra.mxu0 0.0
    %1347 = vmatprep.subr.mxu0 0.0
    %1348 = vmatpush1.xpose.msra.mxu0 0.0
    %1349 = vmatprep.subr.mxu0 0.0
    %1350 = vmatpush1.xpose.msra.mxu0 0.0
    %1351 = vmatprep.subr.mxu0 0.0
    %1352 = vmatpush1.xpose.msra.mxu0 0.0
    %1353 = vmatprep.subr.mxu0 0.0
    %1354 = vmatpush1.xpose.msra.mxu0 0.0
    %1355 = vmatprep.subr.mxu0 0.0
    %1356 = vmatpush1.xpose.msra.mxu0 0.0
    %1357 = vmatprep.subr.mxu0 0.0
    %1358 = vmatpush1.xpose.msra.mxu0 0.0
    %1359 = vmatprep.subr.mxu0 0.0
    %1360 = vmatpush1.xpose.msra.mxu0 0.0
    %1361 = vmatprep.subr.mxu0 0.0
    %1362 = vmatpush1.xpose.msra.mxu0 0.0
    %1363 = vmatprep.subr.mxu0 0.0
    %1364 = vmatpush1.xpose.msra.mxu0 0.0
    %1365 = vmatprep.subr.mxu0 0.0
    %1366 = vmatpush1.xpose.msra.mxu0 0.0
    %1367 = vmatprep.subr.mxu0 0.0
    %1368 = vmatpush1.xpose.msra.mxu0 0.0
    %1369 = vmatprep.subr.mxu0 0.0
    %1370 = vmatpush1.xpose.msra.mxu0 0.0
    %1371 = vmatprep.subr.mxu0 0.0
    %1372 = vmatpush1.xpose.msra.mxu0 0.0
    %1373 = vmatprep.subr.mxu0 0.0
    %1374 = vmatpush1.xpose.msra.mxu0 0.0
    %1375 = vmatprep.subr.mxu0 0.0
    %1376 = vmatpush1.xpose.msra.mxu0 0.0
    %1377 = vmatprep.subr.mxu0 0.0
    %1378 = vmatpush1.xpose.msra.mxu0 0.0
    %1379 = vmatprep.subr.mxu0 0.0
    %1380 = vmatpush1.xpose.msra.mxu0 0.0
    %1381 = vmatprep.subr.mxu0 0.0
    %1382 = vmatpush1.xpose.msra.mxu0 0.0
    %1383 = vmatprep.subr.mxu0 0.0
    %1384 = vmatpush1.xpose.msra.mxu0 0.0
    %1385 = vmatprep.subr.mxu0 0.0
    %1386 = vmatpush1.xpose.msra.mxu0 0.0
    %1387 = vmatprep.subr.mxu0 0.0
    %1388 = vmatpush1.xpose.msra.mxu0 0.0
    %1389 = vmatprep.subr.mxu0 0.0
    %1390 = vmatpush1.xpose.msra.mxu0 0.0
    %1391 = vmatprep.subr.mxu0 0.0
    %1392 = vmatpush1.xpose.msra.mxu0 0.0
    %1393 = vmatprep.mubr.f32.mxu0 0.0
    %1394 = vmatmul.mubr.f32.gmra.mrb[0].mxu0 %v1325
    %v1395 = vpop.f32.mrb[0].mxu0
    %v1396 = vadd.f32 0.0, %v1395
    %v1397 = vpop.f32.mrb[0].mxu0
    %1398 = vdwg.mxu0
    %v1399 = vsel %vm574, %v1318, -3.4028235e+38
    %v1400 = vsel %vm574, %v1396, -3.4028235e+38
    %v1401 = vadd.f32 %v1399, %v414
    %v1402 = vadd.f32 %v1400, %v415
    %v1403 = vsel %vm420, %v1401, -inf
    %1404 = vmax.xlane.f32.xlu0 %v1403
    %v1405 = vpop.xlane.xlu0 %1404
    %v1406 = vsel %vm420, %v1402, -inf
    %1407 = vmax.xlane.f32.xlu0 %v1406
    %v1408 = vpop.xlane.xlu0 %1407
    %v1409 = vsub.f32 %v1401, %v1405
    %v1410 = vsub.f32 %v1402, %v1408
    %v1411 = vmul.f32 %v1409, 1.442695
    %v1412 = vpow.pop %v1411
    %v1413 = vmul.f32 %v1410, 1.442695
    %v1414 = vpow.pop %v1413
    %v1415 = vsel %vm420, %v1412, 0.0
    %1416 = vadd.xlane.f32.xlu0 %v1415
    %v1417 = vpop.xlane.xlu0 %1416
    %v1418 = vsel %vm420, %v1414, 0.0
    %1419 = vadd.xlane.f32.xlu0 %v1418
    %v1420 = vpop.xlane.xlu0 %1419
    %v1421 = vrcp.pop %v1417
    %v1422 = vmul.f32 %v1412, %v1421
    %v1423 = vrcp.pop %v1420
    %v1424 = vmul.f32 %v1414, %v1423
    %1425 = vrot.lane.b32.xlu0 %v205, 48
    %v1426 = vpop.permute.xlu0 %1425
    %v1429 = vsel %vm420, %v1422, 0
    %1431 = vmatprep.subr.mxu0 0.0
    %1432 = vmatpush1.msra.mxu0 %v1426
    %1433 = vmatprep.subr.mxu0 0.0
    %1434 = vmatpush1.msra.mxu0 0.0
    %1435 = vmatprep.subr.mxu0 0.0
    %1436 = vmatpush1.msra.mxu0 0.0
    %1437 = vmatprep.subr.mxu0 0.0
    %1438 = vmatpush1.msra.mxu0 0.0
    %1439 = vmatprep.subr.mxu0 0.0
    %1440 = vmatpush1.msra.mxu0 0.0
    %1441 = vmatprep.subr.mxu0 0.0
    %1442 = vmatpush1.msra.mxu0 0.0
    %1443 = vmatprep.subr.mxu0 0.0
    %1444 = vmatpush1.msra.mxu0 0.0
    %1445 = vmatprep.subr.mxu0 0.0
    %1446 = vmatpush1.msra.mxu0 0.0
    %1447 = vmatprep.subr.mxu0 0.0
    %1448 = vmatpush1.msra.mxu0 0.0
    %1449 = vmatprep.subr.mxu0 0.0
    %1450 = vmatpush1.msra.mxu0 0.0
    %1451 = vmatprep.subr.mxu0 0.0
    %1452 = vmatpush1.msra.mxu0 0.0
    %1453 = vmatprep.subr.mxu0 0.0
    %1454 = vmatpush1.msra.mxu0 0.0
    %1455 = vmatprep.subr.mxu0 0.0
    %1456 = vmatpush1.msra.mxu0 0.0
    %1457 = vmatprep.subr.mxu0 0.0
    %1458 = vmatpush1.msra.mxu0 0.0
    %1459 = vmatprep.subr.mxu0 0.0
    %1460 = vmatpush1.msra.mxu0 0.0
    %1461 = vmatprep.subr.mxu0 0.0
    %1462 = vmatpush1.msra.mxu0 0.0
    %1463 = vmatprep.subr.mxu0 0.0
    %1464 = vmatpush1.msra.mxu0 0.0
    %1465 = vmatprep.subr.mxu0 0.0
    %1466 = vmatpush1.msra.mxu0 0.0
    %1467 = vmatprep.subr.mxu0 0.0
    %1468 = vmatpush1.msra.mxu0 0.0
    %1469 = vmatprep.subr.mxu0 0.0
    %1470 = vmatpush1.msra.mxu0 0.0
    %1471 = vmatprep.subr.mxu0 0.0
    %1472 = vmatpush1.msra.mxu0 0.0
    %1473 = vmatprep.subr.mxu0 0.0
    %1474 = vmatpush1.msra.mxu0 0.0
    %1475 = vmatprep.subr.mxu0 0.0
    %1476 = vmatpush1.msra.mxu0 0.0
    %1477 = vmatprep.subr.mxu0 0.0
    %1478 = vmatpush1.msra.mxu0 0.0
    %1479 = vmatprep.subr.mxu0 0.0
    %1480 = vmatpush1.msra.mxu0 0.0
    %1481 = vmatprep.subr.mxu0 0.0
    %1482 = vmatpush1.msra.mxu0 0.0
    %1483 = vmatprep.subr.mxu0 0.0
    %1484 = vmatpush1.msra.mxu0 0.0
    %1485 = vmatprep.subr.mxu0 0.0
    %1486 = vmatpush1.msra.mxu0 0.0
    %1487 = vmatprep.subr.mxu0 0.0
    %1488 = vmatpush1.msra.mxu0 0.0
    %1489 = vmatprep.subr.mxu0 0.0
    %1490 = vmatpush1.msra.mxu0 0.0
    %1491 = vmatprep.subr.mxu0 0.0
    %1492 = vmatpush1.msra.mxu0 0.0
    %1493 = vmatprep.subr.mxu0 0.0
    %1494 = vmatpush1.msra.mxu0 0.0
    %1495 = vmatprep.mubr.f32.mxu0 0.0
    %1496 = vmatmul.mubr.f32.gmra.mrb[0].mxu0 %v1429
    %v1497 = vpop.f32.mrb[0].mxu0
    %v1498 = vadd.f32 0.0, %v1497
    %v1499 = vpop.f32.mrb[0].mxu0
    %1500 = vdwg.mxu0
    %1501 = vrot.lane.b32.xlu0 %v210, 48
    %v1502 = vpop.permute.xlu0 %1501
    %v1505 = vsel %vm420, %v1424, 0
    %1507 = vmatprep.subr.mxu0 0.0
    %1508 = vmatpush1.msra.mxu0 %v1502
    %1509 = vmatprep.subr.mxu0 0.0
    %1510 = vmatpush1.msra.mxu0 0.0
    %1511 = vmatprep.subr.mxu0 0.0
    %1512 = vmatpush1.msra.mxu0 0.0
    %1513 = vmatprep.subr.mxu0 0.0
    %1514 = vmatpush1.msra.mxu0 0.0
    %1515 = vmatprep.subr.mxu0 0.0
    %1516 = vmatpush1.msra.mxu0 0.0
    %1517 = vmatprep.subr.mxu0 0.0
    %1518 = vmatpush1.msra.mxu0 0.0
    %1519 = vmatprep.subr.mxu0 0.0
    %1520 = vmatpush1.msra.mxu0 0.0
    %1521 = vmatprep.subr.mxu0 0.0
    %1522 = vmatpush1.msra.mxu0 0.0
    %1523 = vmatprep.subr.mxu0 0.0
    %1524 = vmatpush1.msra.mxu0 0.0
    %1525 = vmatprep.subr.mxu0 0.0
    %1526 = vmatpush1.msra.mxu0 0.0
    %1527 = vmatprep.subr.mxu0 0.0
    %1528 = vmatpush1.msra.mxu0 0.0
    %1529 = vmatprep.subr.mxu0 0.0
    %1530 = vmatpush1.msra.mxu0 0.0
    %1531 = vmatprep.subr.mxu0 0.0
    %1532 = vmatpush1.msra.mxu0 0.0
    %1533 = vmatprep.subr.mxu0 0.0
    %1534 = vmatpush1.msra.mxu0 0.0
    %1535 = vmatprep.subr.mxu0 0.0
    %1536 = vmatpush1.msra.mxu0 0.0
    %1537 = vmatprep.subr.mxu0 0.0
    %1538 = vmatpush1.msra.mxu0 0.0
    %1539 = vmatprep.subr.mxu0 0.0
    %1540 = vmatpush1.msra.mxu0 0.0
    %1541 = vmatprep.subr.mxu0 0.0
    %1542 = vmatpush1.msra.mxu0 0.0
    %1543 = vmatprep.subr.mxu0 0.0
    %1544 = vmatpush1.msra.mxu0 0.0
    %1545 = vmatprep.subr.mxu0 0.0
    %1546 = vmatpush1.msra.mxu0 0.0
    %1547 = vmatprep.subr.mxu0 0.0
    %1548 = vmatpush1.msra.mxu0 0.0
    %1549 = vmatprep.subr.mxu0 0.0
    %1550 = vmatpush1.msra.mxu0 0.0
    %1551 = vmatprep.subr.mxu0 0.0
    %1552 = vmatpush1.msra.mxu0 0.0
    %1553 = vmatprep.subr.mxu0 0.0
    %1554 = vmatpush1.msra.mxu0 0.0
    %1555 = vmatprep.subr.mxu0 0.0
    %1556 = vmatpush1.msra.mxu0 0.0
    %1557 = vmatprep.subr.mxu0 0.0
    %1558 = vmatpush1.msra.mxu0 0.0
    %1559 = vmatprep.subr.mxu0 0.0
    %1560 = vmatpush1.msra.mxu0 0.0
    %1561 = vmatprep.subr.mxu0 0.0
    %1562 = vmatpush1.msra.mxu0 0.0
    %1563 = vmatprep.subr.mxu0 0.0
    %1564 = vmatpush1.msra.mxu0 0.0
    %1565 = vmatprep.subr.mxu0 0.0
    %1566 = vmatpush1.msra.mxu0 0.0
    %1567 = vmatprep.subr.mxu0 0.0
    %1568 = vmatpush1.msra.mxu0 0.0
    %1569 = vmatprep.subr.mxu0 0.0
    %1570 = vmatpush1.msra.mxu0 0.0
    %1571 = vmatprep.mubr.f32.mxu0 0.0
    %1572 = vmatmul.mubr.f32.gmra.mrb[0].mxu0 %v1505
    %v1573 = vpop.f32.mrb[0].mxu0
    %v1574 = vadd.f32 0.0, %v1573
    %v1575 = vpop.f32.mrb[0].mxu0
    %1576 = vdwg.mxu0
    %v1578 = vsel %vm420, %v1498, 0
    %v1581 = vsel %vm420, %v1574, 0
    %1583 = vmatprep.subr.mxu0 0.0
    %1584 = vmatpush1.msra.mxu0 %v418
    %1585 = vmatprep.subr.mxu0 0.0
    %1586 = vmatpush1.msra.mxu0 0.0
    %1587 = vmatprep.subr.mxu0 0.0
    %1588 = vmatpush1.msra.mxu0 0.0
    %1589 = vmatprep.subr.mxu0 0.0
    %1590 = vmatpush1.msra.mxu0 0.0
    %1591 = vmatprep.subr.mxu0 0.0
    %1592 = vmatpush1.msra.mxu0 0.0
    %1593 = vmatprep.subr.mxu0 0.0
    %1594 = vmatpush1.msra.mxu0 0.0
    %1595 = vmatprep.subr.mxu0 0.0
    %1596 = vmatpush1.msra.mxu0 0.0
    %1597 = vmatprep.subr.mxu0 0.0
    %1598 = vmatpush1.msra.mxu0 0.0
    %1599 = vmatprep.subr.mxu0 0.0
    %1600 = vmatpush1.msra.mxu0 0.0
    %1601 = vmatprep.subr.mxu0 0.0
    %1602 = vmatpush1.msra.mxu0 0.0
    %1603 = vmatprep.subr.mxu0 0.0
    %1604 = vmatpush1.msra.mxu0 0.0
    %1605 = vmatprep.subr.mxu0 0.0
    %1606 = vmatpush1.msra.mxu0 0.0
    %1607 = vmatprep.subr.mxu0 0.0
    %1608 = vmatpush1.msra.mxu0 0.0
    %1609 = vmatprep.subr.mxu0 0.0
    %1610 = vmatpush1.msra.mxu0 0.0
    %1611 = vmatprep.subr.mxu0 0.0
    %1612 = vmatpush1.msra.mxu0 0.0
    %1613 = vmatprep.subr.mxu0 0.0
    %1614 = vmatpush1.msra.mxu0 0.0
    %1615 = vmatprep.subr.mxu0 0.0
    %1616 = vmatpush1.msra.mxu0 0.0
    %1617 = vmatprep.subr.mxu0 0.0
    %1618 = vmatpush1.msra.mxu0 0.0
    %1619 = vmatprep.subr.mxu0 0.0
    %1620 = vmatpush1.msra.mxu0 0.0
    %1621 = vmatprep.subr.mxu0 0.0
    %1622 = vmatpush1.msra.mxu0 0.0
    %1623 = vmatprep.subr.mxu0 0.0
    %1624 = vmatpush1.msra.mxu0 0.0
    %1625 = vmatprep.subr.mxu0 0.0
    %1626 = vmatpush1.msra.mxu0 0.0
    %1627 = vmatprep.subr.mxu0 0.0
    %1628 = vmatpush1.msra.mxu0 0.0
    %1629 = vmatprep.subr.mxu0 0.0
    %1630 = vmatpush1.msra.mxu0 0.0
    %1631 = vmatprep.subr.mxu0 0.0
    %1632 = vmatpush1.msra.mxu0 0.0
    %1633 = vmatprep.subr.mxu0 0.0
    %1634 = vmatpush1.msra.mxu0 0.0
    %1635 = vmatprep.subr.mxu0 0.0
    %1636 = vmatpush1.msra.mxu0 0.0
    %1637 = vmatprep.subr.mxu0 0.0
    %1638 = vmatpush1.msra.mxu0 0.0
    %1639 = vmatprep.subr.mxu0 0.0
    %1640 = vmatpush1.msra.mxu0 0.0
    %1641 = vmatprep.subr.mxu0 0.0
    %1642 = vmatpush1.msra.mxu0 0.0
    %1643 = vmatprep.subr.mxu0 0.0
    %1644 = vmatpush1.msra.mxu0 0.0
    %1645 = vmatprep.subr.mxu0 0.0
    %1646 = vmatpush1.msra.mxu0 0.0
    %1647 = vmatprep.mubr.f32.mxu0 0.0
    %1648 = vmatmul.mubr.f32.gmra.mrb[0].mxu0 %v1578
    %v1649 = vpop.f32.mrb[0].mxu0
    %v1650 = vadd.f32 0.0, %v1649
    %v1651 = vpop.f32.mrb[0].mxu0
    %1652 = vmatprep.mubr.f32.mxu0 0.0
    %1653 = vmatmul.mubr.f32.gmra.mrb[0].mxu0 %v1581
    %v1654 = vpop.f32.mrb[0].mxu0
    %v1655 = vadd.f32 0.0, %v1654
    %v1656 = vpop.f32.mrb[0].mxu0
    %1657 = vdwg.mxu0
    %v1658 = vadd.f32 %v1235, %v1650
    %v1659 = vadd.f32 %v1240, %v1655
    %1660 = vrot.lane.b32.xlu0 %v306, 104
    %v1661 = vpop.permute.xlu0 %1660
    %1662 = vrot.lane.b32.xlu0 %v397, 104
    %v1663 = vpop.permute.xlu0 %1662
    %v1664 = vsel %vm420, %v1661, 0
    %v1666 = vsel %vm420, %v1663, 0
    %1668 = vmatprep.subr.mxu0 0.0
    %1669 = vmatpush1.xpose.msra.mxu0 %v1666
    %1670 = vmatprep.subr.mxu0 0.0
    %1671 = vmatpush1.xpose.msra.mxu0 0.0
    %1672 = vmatprep.subr.mxu0 0.0
    %1673 = vmatpush1.xpose.msra.mxu0 0.0
    %1674 = vmatprep.subr.mxu0 0.0
    %1675 = vmatpush1.xpose.msra.mxu0 0.0
    %1676 = vmatprep.subr.mxu0 0.0
    %1677 = vmatpush1.xpose.msra.mxu0 0.0
    %1678 = vmatprep.subr.mxu0 0.0
    %1679 = vmatpush1.xpose.msra.mxu0 0.0
    %1680 = vmatprep.subr.mxu0 0.0
    %1681 = vmatpush1.xpose.msra.mxu0 0.0
    %1682 = vmatprep.subr.mxu0 0.0
    %1683 = vmatpush1.xpose.msra.mxu0 0.0
    %1684 = vmatprep.subr.mxu0 0.0
    %1685 = vmatpush1.xpose.msra.mxu0 0.0
    %1686 = vmatprep.subr.mxu0 0.0
    %1687 = vmatpush1.xpose.msra.mxu0 0.0
    %1688 = vmatprep.subr.mxu0 0.0
    %1689 = vmatpush1.xpose.msra.mxu0 0.0
    %1690 = vmatprep.subr.mxu0 0.0
    %1691 = vmatpush1.xpose.msra.mxu0 0.0
    %1692 = vmatprep.subr.mxu0 0.0
    %1693 = vmatpush1.xpose.msra.mxu0 0.0
    %1694 = vmatprep.subr.mxu0 0.0
    %1695 = vmatpush1.xpose.msra.mxu0 0.0
    %1696 = vmatprep.subr.mxu0 0.0
    %1697 = vmatpush1.xpose.msra.mxu0 0.0
    %1698 = vmatprep.subr.mxu0 0.0
    %1699 = vmatpush1.xpose.msra.mxu0 0.0
    %1700 = vmatprep.subr.mxu0 0.0
    %1701 = vmatpush1.xpose.msra.mxu0 0.0
    %1702 = vmatprep.subr.mxu0 0.0
    %1703 = vmatpush1.xpose.msra.mxu0 0.0
    %1704 = vmatprep.subr.mxu0 0.0
    %1705 = vmatpush1.xpose.msra.mxu0 0.0
    %1706 = vmatprep.subr.mxu0 0.0
    %1707 = vmatpush1.xpose.msra.mxu0 0.0
    %1708 = vmatprep.subr.mxu0 0.0
    %1709 = vmatpush1.xpose.msra.mxu0 0.0
    %1710 = vmatprep.subr.mxu0 0.0
    %1711 = vmatpush1.xpose.msra.mxu0 0.0
    %1712 = vmatprep.subr.mxu0 0.0
    %1713 = vmatpush1.xpose.msra.mxu0 0.0
    %1714 = vmatprep.subr.mxu0 0.0
    %1715 = vmatpush1.xpose.msra.mxu0 0.0
    %1716 = vmatprep.subr.mxu0 0.0
    %1717 = vmatpush1.xpose.msra.mxu0 0.0
    %1718 = vmatprep.subr.mxu0 0.0
    %1719 = vmatpush1.xpose.msra.mxu0 0.0
    %1720 = vmatprep.subr.mxu0 0.0
    %1721 = vmatpush1.xpose.msra.mxu0 0.0
    %1722 = vmatprep.subr.mxu0 0.0
    %1723 = vmatpush1.xpose.msra.mxu0 0.0
    %1724 = vmatprep.subr.mxu0 0.0
    %1725 = vmatpush1.xpose.msra.mxu0 0.0
    %1726 = vmatprep.subr.mxu0 0.0
    %1727 = vmatpush1.xpose.msra.mxu0 0.0
    %1728 = vmatprep.subr.mxu0 0.0
    %1729 = vmatpush1.xpose.msra.mxu0 0.0
    %1730 = vmatprep.subr.mxu0 0.0
    %1731 = vmatpush1.xpose.msra.mxu0 0.0
    %1732 = vmatprep.mubr.f32.mxu0 0.0
    %1733 = vmatmul.mubr.f32.gmra.mrb[0].mxu0 %v1664
    %v1734 = vpop.f32.mrb[0].mxu0
    %v1735 = vadd.f32 0.0, %v1734
    %v1736 = vpop.f32.mrb[0].mxu0
    %1737 = vdwg.mxu0
    %1738 = vrot.lane.b32.xlu0 %v307, 104
    %v1739 = vpop.permute.xlu0 %1738
    %1740 = vrot.lane.b32.xlu0 %v398, 104
    %v1741 = vpop.permute.xlu0 %1740
    %v1742 = vsel %vm420, %v1739, 0
    %v1744 = vsel %vm420, %v1741, 0
    %1746 = vmatprep.subr.mxu0 0.0
    %1747 = vmatpush1.xpose.msra.mxu0 %v1744
    %1748 = vmatprep.subr.mxu0 0.0
    %1749 = vmatpush1.xpose.msra.mxu0 0.0
    %1750 = vmatprep.subr.mxu0 0.0
    %1751 = vmatpush1.xpose.msra.mxu0 0.0
    %1752 = vmatprep.subr.mxu0 0.0
    %1753 = vmatpush1.xpose.msra.mxu0 0.0
    %1754 = vmatprep.subr.mxu0 0.0
    %1755 = vmatpush1.xpose.msra.mxu0 0.0
    %1756 = vmatprep.subr.mxu0 0.0
    %1757 = vmatpush1.xpose.msra.mxu0 0.0
    %1758 = vmatprep.subr.mxu0 0.0
    %1759 = vmatpush1.xpose.msra.mxu0 0.0
    %1760 = vmatprep.subr.mxu0 0.0
    %1761 = vmatpush1.xpose.msra.mxu0 0.0
    %1762 = vmatprep.subr.mxu0 0.0
    %1763 = vmatpush1.xpose.msra.mxu0 0.0
    %1764 = vmatprep.subr.mxu0 0.0
    %1765 = vmatpush1.xpose.msra.mxu0 0.0
    %1766 = vmatprep.subr.mxu0 0.0
    %1767 = vmatpush1.xpose.msra.mxu0 0.0
    %1768 = vmatprep.subr.mxu0 0.0
    %1769 = vmatpush1.xpose.msra.mxu0 0.0
    %1770 = vmatprep.subr.mxu0 0.0
    %1771 = vmatpush1.xpose.msra.mxu0 0.0
    %1772 = vmatprep.subr.mxu0 0.0
    %1773 = vmatpush1.xpose.msra.mxu0 0.0
    %1774 = vmatprep.subr.mxu0 0.0
    %1775 = vmatpush1.xpose.msra.mxu0 0.0
    %1776 = vmatprep.subr.mxu0 0.0
    %1777 = vmatpush1.xpose.msra.mxu0 0.0
    %1778 = vmatprep.subr.mxu0 0.0
    %1779 = vmatpush1.xpose.msra.mxu0 0.0
    %1780 = vmatprep.subr.mxu0 0.0
    %1781 = vmatpush1.xpose.msra.mxu0 0.0
    %1782 = vmatprep.subr.mxu0 0.0
    %1783 = vmatpush1.xpose.msra.mxu0 0.0
    %1784 = vmatprep.subr.mxu0 0.0
    %1785 = vmatpush1.xpose.msra.mxu0 0.0
    %1786 = vmatprep.subr.mxu0 0.0
    %1787 = vmatpush1.xpose.msra.mxu0 0.0
    %1788 = vmatprep.subr.mxu0 0.0
    %1789 = vmatpush1.xpose.msra.mxu0 0.0
    %1790 = vmatprep.subr.mxu0 0.0
    %1791 = vmatpush1.xpose.msra.mxu0 0.0
    %1792 = vmatprep.subr.mxu0 0.0
    %1793 = vmatpush1.xpose.msra.mxu0 0.0
    %1794 = vmatprep.subr.mxu0 0.0
    %1795 = vmatpush1.xpose.msra.mxu0 0.0
    %1796 = vmatprep.subr.mxu0 0.0
    %1797 = vmatpush1.xpose.msra.mxu0 0.0
    %1798 = vmatprep.subr.mxu0 0.0
    %1799 = vmatpush1.xpose.msra.mxu0 0.0
    %1800 = vmatprep.subr.mxu0 0.0
    %1801 = vmatpush1.xpose.msra.mxu0 0.0
    %1802 = vmatprep.subr.mxu0 0.0
    %1803 = vmatpush1.xpose.msra.mxu0 0.0
    %1804 = vmatprep.subr.mxu0 0.0
    %1805 = vmatpush1.xpose.msra.mxu0 0.0
    %1806 = vmatprep.subr.mxu0 0.0
    %1807 = vmatpush1.xpose.msra.mxu0 0.0
    %1808 = vmatprep.subr.mxu0 0.0
    %1809 = vmatpush1.xpose.msra.mxu0 0.0
    %1810 = vmatprep.mubr.f32.mxu0 0.0
    %1811 = vmatmul.mubr.f32.gmra.mrb[0].mxu0 %v1742
    %v1812 = vpop.f32.mrb[0].mxu0
    %v1813 = vadd.f32 0.0, %v1812
    %v1814 = vpop.f32.mrb[0].mxu0
    %1815 = vdwg.mxu0
    %v1816 = vsel %vm574, %v1735, -3.4028235e+38
    %v1817 = vsel %vm574, %v1813, -3.4028235e+38
    %v1818 = vadd.f32 %v1816, %v414
    %v1819 = vadd.f32 %v1817, %v415
    %v1820 = vsel %vm420, %v1818, -inf
    %1821 = vmax.xlane.f32.xlu0 %v1820
    %v1822 = vpop.xlane.xlu0 %1821
    %v1823 = vsel %vm420, %v1819, -inf
    %1824 = vmax.xlane.f32.xlu0 %v1823
    %v1825 = vpop.xlane.xlu0 %1824
    %v1826 = vsub.f32 %v1818, %v1822
    %v1827 = vsub.f32 %v1819, %v1825
    %v1828 = vmul.f32 %v1826, 1.442695
    %v1829 = vpow.pop %v1828
    %v1830 = vmul.f32 %v1827, 1.442695
    %v1831 = vpow.pop %v1830
    %v1832 = vsel %vm420, %v1829, 0.0
    %1833 = vadd.xlane.f32.xlu0 %v1832
    %v1834 = vpop.xlane.xlu0 %1833
    %v1835 = vsel %vm420, %v1831, 0.0
    %1836 = vadd.xlane.f32.xlu0 %v1835
    %v1837 = vpop.xlane.xlu0 %1836
    %v1838 = vrcp.pop %v1834
    %v1839 = vmul.f32 %v1829, %v1838
    %v1840 = vrcp.pop %v1837
    %v1841 = vmul.f32 %v1831, %v1840
    %1842 = vrot.lane.b32.xlu0 %v205, 40
    %v1843 = vpop.permute.xlu0 %1842
    %v1846 = vsel %vm420, %v1839, 0
    %1848 = vmatprep.subr.mxu0 0.0
    %1849 = vmatpush1.msra.mxu0 %v1843
    %1850 = vmatprep.subr.mxu0 0.0
    %1851 = vmatpush1.msra.mxu0 0.0
    %1852 = vmatprep.subr.mxu0 0.0
    %1853 = vmatpush1.msra.mxu0 0.0
    %1854 = vmatprep.subr.mxu0 0.0
    %1855 = vmatpush1.msra.mxu0 0.0
    %1856 = vmatprep.subr.mxu0 0.0
    %1857 = vmatpush1.msra.mxu0 0.0
    %1858 = vmatprep.subr.mxu0 0.0
    %1859 = vmatpush1.msra.mxu0 0.0
    %1860 = vmatprep.subr.mxu0 0.0
    %1861 = vmatpush1.msra.mxu0 0.0
    %1862 = vmatprep.subr.mxu0 0.0
    %1863 = vmatpush1.msra.mxu0 0.0
    %1864 = vmatprep.subr.mxu0 0.0
    %1865 = vmatpush1.msra.mxu0 0.0
    %1866 = vmatprep.subr.mxu0 0.0
    %1867 = vmatpush1.msra.mxu0 0.0
    %1868 = vmatprep.subr.mxu0 0.0
    %1869 = vmatpush1.msra.mxu0 0.0
    %1870 = vmatprep.subr.mxu0 0.0
    %1871 = vmatpush1.msra.mxu0 0.0
    %1872 = vmatprep.subr.mxu0 0.0
    %1873 = vmatpush1.msra.mxu0 0.0
    %1874 = vmatprep.subr.mxu0 0.0
    %1875 = vmatpush1.msra.mxu0 0.0
    %1876 = vmatprep.subr.mxu0 0.0
    %1877 = vmatpush1.msra.mxu0 0.0
    %1878 = vmatprep.subr.mxu0 0.0
    %1879 = vmatpush1.msra.mxu0 0.0
    %1880 = vmatprep.subr.mxu0 0.0
    %1881 = vmatpush1.msra.mxu0 0.0
    %1882 = vmatprep.subr.mxu0 0.0
    %1883 = vmatpush1.msra.mxu0 0.0
    %1884 = vmatprep.subr.mxu0 0.0
    %1885 = vmatpush1.msra.mxu0 0.0
    %1886 = vmatprep.subr.mxu0 0.0
    %1887 = vmatpush1.msra.mxu0 0.0
    %1888 = vmatprep.subr.mxu0 0.0
    %1889 = vmatpush1.msra.mxu0 0.0
    %1890 = vmatprep.subr.mxu0 0.0
    %1891 = vmatpush1.msra.mxu0 0.0
    %1892 = vmatprep.subr.mxu0 0.0
    %1893 = vmatpush1.msra.mxu0 0.0
    %1894 = vmatprep.subr.mxu0 0.0
    %1895 = vmatpush1.msra.mxu0 0.0
    %1896 = vmatprep.subr.mxu0 0.0
    %1897 = vmatpush1.msra.mxu0 0.0
    %1898 = vmatprep.subr.mxu0 0.0
    %1899 = vmatpush1.msra.mxu0 0.0
    %1900 = vmatprep.subr.mxu0 0.0
    %1901 = vmatpush1.msra.mxu0 0.0
    %1902 = vmatprep.subr.mxu0 0.0
    %1903 = vmatpush1.msra.mxu0 0.0
    %1904 = vmatprep.subr.mxu0 0.0
    %1905 = vmatpush1.msra.mxu0 0.0
    %1906 = vmatprep.subr.mxu0 0.0
    %1907 = vmatpush1.msra.mxu0 0.0
    %1908 = vmatprep.subr.mxu0 0.0
    %1909 = vmatpush1.msra.mxu0 0.0
    %1910 = vmatprep.subr.mxu0 0.0
    %1911 = vmatpush1.msra.mxu0 0.0
    %1912 = vmatprep.mubr.f32.mxu0 0.0
    %1913 = vmatmul.mubr.f32.gmra.mrb[0].mxu0 %v1846
    %v1914 = vpop.f32.mrb[0].mxu0
    %v1915 = vadd.f32 0.0, %v1914
    %v1916 = vpop.f32.mrb[0].mxu0
    %1917 = vdwg.mxu0
    %1918 = vrot.lane.b32.xlu0 %v210, 40
    %v1919 = vpop.permute.xlu0 %1918
    %v1922 = vsel %vm420, %v1841, 0
    %1924 = vmatprep.subr.mxu0 0.0
    %1925 = vmatpush1.msra.mxu0 %v1919
    %1926 = vmatprep.subr.mxu0 0.0
    %1927 = vmatpush1.msra.mxu0 0.0
    %1928 = vmatprep.subr.mxu0 0.0
    %1929 = vmatpush1.msra.mxu0 0.0
    %1930 = vmatprep.subr.mxu0 0.0
    %1931 = vmatpush1.msra.mxu0 0.0
    %1932 = vmatprep.subr.mxu0 0.0
    %1933 = vmatpush1.msra.mxu0 0.0
    %1934 = vmatprep.subr.mxu0 0.0
    %1935 = vmatpush1.msra.mxu0 0.0
    %1936 = vmatprep.subr.mxu0 0.0
    %1937 = vmatpush1.msra.mxu0 0.0
    %1938 = vmatprep.subr.mxu0 0.0
    %1939 = vmatpush1.msra.mxu0 0.0
    %1940 = vmatprep.subr.mxu0 0.0
    %1941 = vmatpush1.msra.mxu0 0.0
    %1942 = vmatprep.subr.mxu0 0.0
    %1943 = vmatpush1.msra.mxu0 0.0
    %1944 = vmatprep.subr.mxu0 0.0
    %1945 = vmatpush1.msra.mxu0 0.0
    %1946 = vmatprep.subr.mxu0 0.0
    %1947 = vmatpush1.msra.mxu0 0.0
    %1948 = vmatprep.subr.mxu0 0.0
    %1949 = vmatpush1.msra.mxu0 0.0
    %1950 = vmatprep.subr.mxu0 0.0
    %1951 = vmatpush1.msra.mxu0 0.0
    %1952 = vmatprep.subr.mxu0 0.0
    %1953 = vmatpush1.msra.mxu0 0.0
    %1954 = vmatprep.subr.mxu0 0.0
    %1955 = vmatpush1.msra.mxu0 0.0
    %1956 = vmatprep.subr.mxu0 0.0
    %1957 = vmatpush1.msra.mxu0 0.0
    %1958 = vmatprep.subr.mxu0 0.0
    %1959 = vmatpush1.msra.mxu0 0.0
    %1960 = vmatprep.subr.mxu0 0.0
    %1961 = vmatpush1.msra.mxu0 0.0
    %1962 = vmatprep.subr.mxu0 0.0
    %1963 = vmatpush1.msra.mxu0 0.0
    %1964 = vmatprep.subr.mxu0 0.0
    %1965 = vmatpush1.msra.mxu0 0.0
    %1966 = vmatprep.subr.mxu0 0.0
    %1967 = vmatpush1.msra.mxu0 0.0
    %1968 = vmatprep.subr.mxu0 0.0
    %1969 = vmatpush1.msra.mxu0 0.0
    %1970 = vmatprep.subr.mxu0 0.0
    %1971 = vmatpush1.msra.mxu0 0.0
    %1972 = vmatprep.subr.mxu0 0.0
    %1973 = vmatpush1.msra.mxu0 0.0
    %1974 = vmatprep.subr.mxu0 0.0
    %1975 = vmatpush1.msra.mxu0 0.0
    %1976 = vmatprep.subr.mxu0 0.0
    %1977 = vmatpush1.msra.mxu0 0.0
    %1978 = vmatprep.subr.mxu0 0.0
    %1979 = vmatpush1.msra.mxu0 0.0
    %1980 = vmatprep.subr.mxu0 0.0
    %1981 = vmatpush1.msra.mxu0 0.0
    %1982 = vmatprep.subr.mxu0 0.0
    %1983 = vmatpush1.msra.mxu0 0.0
    %1984 = vmatprep.subr.mxu0 0.0
    %1985 = vmatpush1.msra.mxu0 0.0
    %1986 = vmatprep.subr.mxu0 0.0
    %1987 = vmatpush1.msra.mxu0 0.0
    %1988 = vmatprep.mubr.f32.mxu0 0.0
    %1989 = vmatmul.mubr.f32.gmra.mrb[0].mxu0 %v1922
    %v1990 = vpop.f32.mrb[0].mxu0
    %v1991 = vadd.f32 0.0, %v1990
    %v1992 = vpop.f32.mrb[0].mxu0
    %1993 = vdwg.mxu0
    %v1995 = vsel %vm420, %v1915, 0
    %v1998 = vsel %vm420, %v1991, 0
    %2000 = vmatprep.subr.mxu0 0.0
    %2001 = vmatpush1.msra.mxu0 %v419
    %2002 = vmatprep.subr.mxu0 0.0
    %2003 = vmatpush1.msra.mxu0 0.0
    %2004 = vmatprep.subr.mxu0 0.0
    %2005 = vmatpush1.msra.mxu0 0.0
    %2006 = vmatprep.subr.mxu0 0.0
    %2007 = vmatpush1.msra.mxu0 0.0
    %2008 = vmatprep.subr.mxu0 0.0
    %2009 = vmatpush1.msra.mxu0 0.0
    %2010 = vmatprep.subr.mxu0 0.0
    %2011 = vmatpush1.msra.mxu0 0.0
    %2012 = vmatprep.subr.mxu0 0.0
    %2013 = vmatpush1.msra.mxu0 0.0
    %2014 = vmatprep.subr.mxu0 0.0
    %2015 = vmatpush1.msra.mxu0 0.0
    %2016 = vmatprep.subr.mxu0 0.0
    %2017 = vmatpush1.msra.mxu0 0.0
    %2018 = vmatprep.subr.mxu0 0.0
    %2019 = vmatpush1.msra.mxu0 0.0
    %2020 = vmatprep.subr.mxu0 0.0
    %2021 = vmatpush1.msra.mxu0 0.0
    %2022 = vmatprep.subr.mxu0 0.0
    %2023 = vmatpush1.msra.mxu0 0.0
    %2024 = vmatprep.subr.mxu0 0.0
    %2025 = vmatpush1.msra.mxu0 0.0
    %2026 = vmatprep.subr.mxu0 0.0
    %2027 = vmatpush1.msra.mxu0 0.0
    %2028 = vmatprep.subr.mxu0 0.0
    %2029 = vmatpush1.msra.mxu0 0.0
    %2030 = vmatprep.subr.mxu0 0.0
    %2031 = vmatpush1.msra.mxu0 0.0
    %2032 = vmatprep.subr.mxu0 0.0
    %2033 = vmatpush1.msra.mxu0 0.0
    %2034 = vmatprep.subr.mxu0 0.0
    %2035 = vmatpush1.msra.mxu0 0.0
    %2036 = vmatprep.subr.mxu0 0.0
    %2037 = vmatpush1.msra.mxu0 0.0
    %2038 = vmatprep.subr.mxu0 0.0
    %2039 = vmatpush1.msra.mxu0 0.0
    %2040 = vmatprep.subr.mxu0 0.0
    %2041 = vmatpush1.msra.mxu0 0.0
    %2042 = vmatprep.subr.mxu0 0.0
    %2043 = vmatpush1.msra.mxu0 0.0
    %2044 = vmatprep.subr.mxu0 0.0
    %2045 = vmatpush1.msra.mxu0 0.0
    %2046 = vmatprep.subr.mxu0 0.0
    %2047 = vmatpush1.msra.mxu0 0.0
    %2048 = vmatprep.subr.mxu0 0.0
    %2049 = vmatpush1.msra.mxu0 0.0
    %2050 = vmatprep.subr.mxu0 0.0
    %2051 = vmatpush1.msra.mxu0 0.0
    %2052 = vmatprep.subr.mxu0 0.0
    %2053 = vmatpush1.msra.mxu0 0.0
    %2054 = vmatprep.subr.mxu0 0.0
    %2055 = vmatpush1.msra.mxu0 0.0
    %2056 = vmatprep.subr.mxu0 0.0
    %2057 = vmatpush1.msra.mxu0 0.0
    %2058 = vmatprep.subr.mxu0 0.0
    %2059 = vmatpush1.msra.mxu0 0.0
    %2060 = vmatprep.subr.mxu0 0.0
    %2061 = vmatpush1.msra.mxu0 0.0
    %2062 = vmatprep.subr.mxu0 0.0
    %2063 = vmatpush1.msra.mxu0 0.0
    %2064 = vmatprep.mubr.f32.mxu0 0.0
    %2065 = vmatmul.mubr.f32.gmra.mrb[0].mxu0 %v1995
    %v2066 = vpop.f32.mrb[0].mxu0
    %v2067 = vadd.f32 0.0, %v2066
    %v2068 = vpop.f32.mrb[0].mxu0
    %2069 = vmatprep.mubr.f32.mxu0 0.0
    %2070 = vmatmul.mubr.f32.gmra.mrb[0].mxu0 %v1998
    %v2071 = vpop.f32.mrb[0].mxu0
    %v2072 = vadd.f32 0.0, %v2071
    %v2073 = vpop.f32.mrb[0].mxu0
    %2074 = vdwg.mxu0
    %v2075 = vadd.f32 %v1658, %v2067
    %v2076 = vadd.f32 %v1659, %v2072
    %v2077 = vld [vmem:[%s4] sm:$0x1]
    %v2079 = vlaneseq
    %v2080 = vshrl.u32 %v2079, 7
    %v2081 = vsub.s32 0, %v2080
    %v2082 = vrot.slane %v2077, %v2081
    %v2084 = vadd.f32 %v2075, %v2082
    %v2085 = vadd.f32 %v2076, %v2082
    %2086 = vst.msk [vmem:[#allocation13] sm:$0xff] %vm131, %v2084
    %2087 = vst.msk [vmem:[#allocation13 + $0x8] sm:$0xff] %vm131, %v2085
    // Predicated region
    $region62: #{self_attention_forward.1} parent=1 // pred_check
      _
    $region63: #{self_attention_forward.1} parent=1 // pred_check_branch
      %2089 = sbr.rel (0) target = $region65
    $region64: #{self_attention_forward.1} parent=1 // pred_region
      %s2091 = ssub.s32 256, 256
      %2092 = vsyncadd [#allocation4], %s2091
      %s2093 = sshll.u32 [#allocation13], 4
      %s2094 = int_to_ptr.vmem [resolvable:$true] %s2093
      %2099 = dma.vmem_to_hbm [thread:$0]  %s2094, 256, %s9, [#allocation4], 128, 128, 8
    $region65: #{self_attention_forward.1} parent=1 // pred_fallthru
      _
    // Predicated region
    $region66: #{self_attention_forward.1} parent=1 // pred_check
      _
    $region67: #{self_attention_forward.1} parent=1 // pred_check_branch
      %2101 = sbr.rel (0) target = $region69
    $region68: #{self_attention_forward.1} parent=1 // pred_region
      _
    $region69: #{self_attention_forward.1} parent=1 // pred_fallthru
      _
    // Predicated region
    $region70: #{self_attention_forward.1} parent=1 // pred_check
      _
    $region71: #{self_attention_forward.1} parent=1 // pred_check_branch
      %2103 = sbr.rel (0) target = $region73
    $region72: #{self_attention_forward.1} parent=1 // pred_region
      _
    $region73: #{self_attention_forward.1} parent=1 // pred_fallthru
      _
    // Predicated region
    $region74: #{self_attention_forward.1} parent=1 // pred_check
      _
    $region75: #{self_attention_forward.1} parent=1 // pred_check_branch
      %2105 = sbr.rel (0) target = $region77
    $region76: #{self_attention_forward.1} parent=1 // pred_region
      %2106 = dma.done [#allocation4], 256
    $region77: #{self_attention_forward.1} parent=1 // pred_fallthru
      _
    // Predicated region
    $region78: #{self_attention_forward.1} parent=1 // pred_check
      _
    $region79: #{self_attention_forward.1} parent=1 // pred_check_branch
      %2108 = sbr.rel (0) target = $region81
    $region80: #{self_attention_forward.1} parent=1 // pred_region
      _
    $region81: #{self_attention_forward.1} parent=1 // pred_fallthru
      _
    // Predicated region
    $region82: #{self_attention_forward.1} parent=1 // pred_check
      _
    $region83: #{self_attention_forward.1} parent=1 // pred_check_branch
      %2110 = sbr.rel (0) target = $region85
    $region84: #{self_attention_forward.1} parent=1 // pred_region
      _
    $region85: #{self_attention_forward.1} parent=1 // pred_fallthru
      _
    %2111 = vsyncpa [#allocation3], 1
    %2112 = vsyncpa [#allocation6], 1
    %2113 = vsyncpa [#allocation9], 1
    %2114 = vsyncpa [#allocation12], 1
    %2115 = vsyncpa [#allocation4], 1

</llo_original>
